<compile_context>
chip_gen: v5e
topology: v5e:2x2
jax: 0.10.0
libtpu: 0.0.40
codegen_flags: <defaults>
</compile_context>

<pallas_src>
import jax
import jax.numpy as jnp
import numpy as np
from jax.experimental import pallas as pl
from jax.experimental.pallas import tpu as pltpu


def _round_up(x, m):
    return (x + m - 1) // m * m


def _vmem_capacity_bytes(default=128 << 20):
    """Physical VMEM per TensorCore (for generation-aware tile sizing)."""
    try:
        return int(pltpu.get_tpu_info().vmem_capacity_bytes)
    except Exception:
        return default


def _pick_h_tile(H, W, cin, cout_p, k_total_p, pmax, vmem_budget):
    """Largest divisor t of H such that the flat output tile t*W is lane-dense
    (multiple of 128) and the per-step VMEM footprint (double-buffered padded
    input + weight, bf16 patch scratch, double-buffered f32 output tile) fits
    `vmem_budget`.  Falls back to the smallest lane-dense divisor, then to the
    full height (full-array output block -> still lowers, just masked stores)."""
    Hp, Wp = H + 2 * pmax, W + 2 * pmax
    fixed = 2 * cin * Hp * Wp * 4 + 2 * cout_p * k_total_p * 2
    cands = [t for t in range(1, H + 1) if H % t == 0 and (t * W) % 128 == 0]
    fits = [t for t in cands
            if fixed + t * W * (k_total_p * 2 + 2 * cout_p * 4) <= vmem_budget]
    if fits:
        return max(fits)
    if cands:
        return min(cands)
    return H


def _make_kernel(dilations, k, h_tile, W, pmax, cin, cout_p, k_total, k_total_p):
    zero_rows = k_total_p - k_total

    def kernel(x_ref, w_ref, o_ref, patch_ref):
        # x_ref:     (1, Cin, Hp, Wp)  f32   max-padded image (resident per batch)
        # w_ref:     (Cout_p, K_p)     bf16  fused depthwise*pointwise weight
        # o_ref:     (1, Cout_p, h_tile*W) f32  lane-dense output slab
        # patch_ref: (K_p, h_tile, W)  bf16  VMEM tap-major im2col scratch
        h0 = pl.multiple_of(pl.program_id(1) * h_tile, h_tile)

        # K was zero-padded up to a multiple of 128; the padded patch rows must
        # be zeroed (uninitialized VMEM could hold NaNs and 0 * NaN != 0).
        if zero_rows:
            patch_ref[k_total:, :, :] = jnp.zeros(
                (zero_rows, h_tile, W), dtype=jnp.bfloat16)

        # im2col with the spatial dims on (sublane, lane): each tap copy is a
        # stack of Cin dense (h_tile, W) tiles (no Cin-on-lanes masked stores).
        # The interior of the single pmax reflect pad is bit-identical to the
        # per-dilation reflect pads.
        col = 0
        for d in dilations:
            off = pmax - d * (k - 1) // 2            # static per-dilation offset
            for ki in range(k):
                r = h0 + off + ki * d                # dynamic row start (H axis)
                for kj in range(k):
                    c = off + kj * d                 # static col start (W axis)
                    patch_ref[col:col + cin, :, :] = x_ref[
                        0, :, pl.ds(r, h_tile), pl.ds(c, W)].astype(jnp.bfloat16)
                    col += cin

        # One fused MXU contraction over K = num_d*k*k*Cin (padded to 128):
        # (Cout_p, K_p) x (K_p, h_tile*W) -> (Cout_p, h_tile*W).  The sum over
        # dilations falls out of the contraction; bf16 operands, f32 accum.
        rhs = patch_ref[...].reshape(k_total_p, h_tile * W)
        y = jax.lax.dot_general(w_ref[...], rhs, (((1,), (0,)), ((), ())),
                                preferred_element_type=jnp.float32)
        o_ref[...] = y.reshape(1, cout_p, h_tile * W).astype(o_ref.dtype)

    return kernel


def dilated_separable_conv_multiweight(x_nchw, wdw, wpw, dilations, h_tile=None):
    """Forward pass of DilatedSeparableConvolutionMultiWeight.

    x_nchw: (B, Cin, H, W) f32
    wdw:    (num_d, Cin, k, k)   depthwise weights (torch (Cin,1,k,k) squeezed)
    wpw:    (num_d, Cout, Cin)   pointwise weights (torch (Cout,Cin,1,1) squeezed)
    returns (B, Cout, H, W) = sum_d pointwise_d(depthwise_d(reflect_pad_d(x)))
    """
    B, Cin, H, W = x_nchw.shape
    num_d, Cout, _ = wpw.shape
    k = wdw.shape[-1]
    dilations = tuple(int(d) for d in dilations)

    pmax = max(dilations) * (k - 1) // 2
    assert pmax < H and pmax < W, "reflect padding requires pad < spatial dim"

    # Pad Cout to the sublane granule and K to the lane granule so every vreg
    # access (output stores, matmul tiles) is full-width; zero rows/cols are free.
    cout_p = _round_up(Cout, 8)
    k_total = num_d * k * k * Cin
    k_total_p = _round_up(k_total, 128)

    capacity = _vmem_capacity_bytes()
    if h_tile is None:
        h_tile = _pick_h_tile(H, W, Cin, cout_p, k_total_p, pmax,
                              vmem_budget=int(0.7 * capacity))
    assert H % h_tile == 0, "h_tile must divide H"
    assert (h_tile * W) % 128 == 0 or h_tile == H, \
        "pick h_tile so the flat output tile is lane-dense (multiple of 128)"

    # Channels-first (the module's native NCHW) single reflect pad with the
    # maximum padding: no wrapper-side transpose, one HBM copy of the input.
    xpad = jnp.pad(x_nchw, ((0, 0), (0, 0), (pmax, pmax), (pmax, pmax)),
                   mode="reflect")
    Hp, Wp = H + 2 * pmax, W + 2 * pmax

    # Fused weight, hoisted out of the kernel:
    #   Wc[o, (d,ki,kj,c)] = wdw[d,c,ki,kj] * wpw[d,o,c]
    wc = jnp.einsum("dcij,doc->odijc", wdw, wpw).reshape(Cout, k_total)
    wc = jnp.pad(wc, ((0, cout_p - Cout), (0, k_total_p - k_total)))
    wc = wc.astype(jnp.bfloat16)   # bf16 MXU operand; accumulation stays f32

    kernel = _make_kernel(dilations, k, h_tile, W, pmax, Cin, cout_p,
                          k_total, k_total_p)

    grid = (B, H // h_tile)   # both axes independent -> megacore / v7x 2-TC sharding

    # Explicit VMEM budget: double-buffered resident padded input + weight,
    # bf16 patch scratch, double-buffered f32 output tile (+ headroom).
    footprint = (2 * Cin * Hp * Wp * 4 + 2 * cout_p * k_total_p * 2
                 + h_tile * W * k_total_p * 2 + 2 * cout_p * h_tile * W * 4)
    vmem_limit = max(2 * footprint, 32 << 20)
    vmem_limit = min(vmem_limit, int(0.9 * capacity))
    vmem_limit = max(vmem_limit, footprint + (2 << 20))   # never below what we need

    # TODO(synk): for padded frames that exceed the VMEM budget (notably v7x's
    # 64 MiB/TC), switch in_specs[0] to memory_space=pl.ANY and manually
    # double-buffer halo'd (h_tile + 2*pmax)-row slabs with make_async_copy.
    # TODO(synk): single-buffer the constant-index image/weight blocks via
    # pipeline_mode=pl.Buffered(1) to halve the resident footprint.
    y_flat = pl.pallas_call(
        kernel,
        out_shape=jax.ShapeDtypeStruct((B, cout_p, H * W), jnp.float32),
        grid=grid,
        in_specs=[
            # Padded image: block index ignores the H-tile axis -> DMA'd once
            # per batch element and kept resident across its H tiles.
            pl.BlockSpec((1, Cin, Hp, Wp), lambda b, i: (b, 0, 0, 0)),
            # Fused weight: constant index map -> fetched once.
            pl.BlockSpec((cout_p, k_total_p), lambda b, i: (0, 0)),
        ],
        out_specs=pl.BlockSpec((1, cout_p, h_tile * W), lambda b, i: (b, 0, i)),
        scratch_shapes=[pltpu.VMEM((k_total_p, h_tile, W), jnp.bfloat16)],
        compiler_params=pltpu.CompilerParams(
            dimension_semantics=("parallel", "parallel"),
            vmem_limit_bytes=int(vmem_limit)),
    )(xpad, wc)

    # Drop the Cout padding; flat (B, Cout, H*W) -> NCHW is a pure reshape.
    return y_flat[:, :Cout, :].reshape(B, Cout, H, W)


def reference_forward(x_nchw, wdw, wpw, dilations):
    """Pure-JAX (XLA conv) reference matching the PyTorch module."""
    Cin = x_nchw.shape[1]
    k = wdw.shape[-1]
    y_sum = None
    for di, d in enumerate(dilations):
        p = d * (k - 1) // 2
        xp = jnp.pad(x_nchw, ((0, 0), (0, 0), (p, p), (p, p)), mode="reflect")
        w_dw = wdw[di][:, None, :, :]            # (Cin, 1, k, k)
        dwo = jax.lax.conv_general_dilated(
            xp, w_dw, window_strides=(1, 1), padding="VALID",
            rhs_dilation=(d, d),
            dimension_numbers=("NCHW", "OIHW", "NCHW"),
            feature_group_count=Cin)
        w_pw = wpw[di][:, :, None, None]         # (Cout, Cin, 1, 1)
        y = jax.lax.conv_general_dilated(
            dwo, w_pw, window_strides=(1, 1), padding="VALID",
            dimension_numbers=("NCHW", "OIHW", "NCHW"))
        y_sum = y if y_sum is None else y_sum + y
    return y_sum


if __name__ == "__main__":
    # small, deterministic problem
    B, Cin, Cout, H, W = 2, 4, 8, 16, 16
    k = 3
    dilations = [1, 2, 3]
    num_d = len(dilations)

    key = jax.random.PRNGKey(0)
    kx, kd, kp = jax.random.split(key, 3)

    x = jax.random.normal(kx, (B, Cin, H, W), dtype=jnp.float32)
    # depthwise weights: per dilation, torch shape (Cin, 1, k, k) -> stored squeezed
    wdw = 0.1 * jax.random.normal(kd, (num_d, Cin, k, k), dtype=jnp.float32)
    # pointwise weights: per dilation, torch shape (Cout, Cin, 1, 1) -> stored squeezed
    wpw = 0.1 * jax.random.normal(kp, (num_d, Cout, Cin), dtype=jnp.float32)

    y_ref = jax.block_until_ready(reference_forward(x, wdw, wpw, dilations))

    # h_tile=8 -> grid (2, 2): exercises both parallel grid axes with a
    # lane-dense (8*16 = 128) flat output tile.
    y = dilated_separable_conv_multiweight(x, wdw, wpw, dilations, h_tile=8)
    y = jax.block_until_ready(y)
    assert y.shape == (B, Cout, H, W)

    # bf16 MXU operands (f32 accumulation) + a different accumulation order
    # than the per-dilation f32 convs -> tolerance is bf16-level, not f32-level.
    np.testing.assert_allclose(np.asarray(y), np.asarray(y_ref),
                               rtol=1e-2, atol=1e-2)

    # Also exercise the generation-aware automatic tile picker.
    y_auto = jax.block_until_ready(
        dilated_separable_conv_multiweight(x, wdw, wpw, dilations))
    np.testing.assert_allclose(np.asarray(y_auto), np.asarray(y_ref),
                               rtol=1e-2, atol=1e-2)

    print("KERNEL_OK")
</pallas_src>

<mosaic_0001>
module attributes {stable_mosaic.version = 11 : i64} {
  func.func @kernel(%arg0: i32, %arg1: i32, %arg2: memref<1x4x22x22xf32, #tpu.memory_space<vmem>>, %arg3: memref<8x128xbf16, #tpu.memory_space<vmem>>, %arg4: memref<1x8x128xf32, #tpu.memory_space<vmem>>, %arg5: memref<128x8x16xbf16, #tpu.memory_space<vmem>>) attributes {dimension_semantics = [#tpu.dimension_semantics<parallel>, #tpu.dimension_semantics<parallel>], iteration_bounds = array<i64: 2, 2>, scalar_prefetch = 0 : i64, scratch_operands = 1 : i64, tpu.core_type = #tpu.core_type<tc>, window_params = [{transform_indices = @transform_0, window_bounds = array<i64: 1, 4, 22, 22>}, {pipeline_mode = #tpu.pipeline_mode<synchronous>, transform_indices = @transform_1, window_bounds = array<i64: 8, 128>}, {transform_indices = @transform_2, window_bounds = array<i64: 1, 8, 128>}]} {
    %c8_i32 = arith.constant 8 : i32
    %0 = arith.muli %arg1, %c8_i32 : i32
    %1 = tpu.assume_multiple %0, 8 : i32
    %cst = arith.constant 0.000000e+00 : bf16
    %2 = vector.broadcast %cst : bf16 to vector<20x8x16xbf16>
    %c108 = arith.constant 108 : index
    %c0 = arith.constant 0 : index
    %c0_0 = arith.constant 0 : index
    %3 = vector.load %arg5[%c108, %c0, %c0_0] : memref<128x8x16xbf16, #tpu.memory_space<vmem>>, vector<20x8x16xbf16>
    tpu.vector_store %arg5[%c108, %c0, %c0_0], %2 {strides = array<i32>} : memref<128x8x16xbf16, #tpu.memory_space<vmem>>, vector<20x8x16xbf16>,
    %c2_i32 = arith.constant 2 : i32
    %4 = arith.addi %1, %c2_i32 : i32
    %c0_i32 = arith.constant 0 : i32
    %5 = arith.addi %4, %c0_i32 : i32
    %c0_1 = arith.constant 0 : index
    %c0_2 = arith.constant 0 : index
    %6 = arith.index_cast %5 : i32 to index
    %c2 = arith.constant 2 : index
    %7 = vector.load %arg2[%c0_1, %c0_2, %6, %c2] : memref<1x4x22x22xf32, #tpu.memory_space<vmem>>, vector<1x4x8x16xf32>
    %8 = vector.shape_cast %7 : vector<1x4x8x16xf32> to vector<4x8x16xf32>
    %9 = arith.truncf %8 : vector<4x8x16xf32> to vector<4x8x16xbf16>
    %c0_3 = arith.constant 0 : index
    %c0_4 = arith.constant 0 : index
    %c0_5 = arith.constant 0 : index
    %10 = vector.load %arg5[%c0_3, %c0_4, %c0_5] : memref<128x8x16xbf16, #tpu.memory_space<vmem>>, vector<4x8x16xbf16>
    tpu.vector_store %arg5[%c0_3, %c0_4, %c0_5], %9 {strides = array<i32>} : memref<128x8x16xbf16, #tpu.memory_space<vmem>>, vector<4x8x16xbf16>,
    %c0_6 = arith.constant 0 : index
    %c0_7 = arith.constant 0 : index
    %11 = arith.index_cast %5 : i32 to index
    %c3 = arith.constant 3 : index
    %12 = vector.load %arg2[%c0_6, %c0_7, %11, %c3] : memref<1x4x22x22xf32, #tpu.memory_space<vmem>>, vector<1x4x8x16xf32>
    %13 = vector.shape_cast %12 : vector<1x4x8x16xf32> to vector<4x8x16xf32>
    %14 = arith.truncf %13 : vector<4x8x16xf32> to vector<4x8x16xbf16>
    %c4 = arith.constant 4 : index
    %c0_8 = arith.constant 0 : index
    %c0_9 = arith.constant 0 : index
    %15 = vector.load %arg5[%c4, %c0_8, %c0_9] : memref<128x8x16xbf16, #tpu.memory_space<vmem>>, vector<4x8x16xbf16>
    tpu.vector_store %arg5[%c4, %c0_8, %c0_9], %14 {strides = array<i32>} : memref<128x8x16xbf16, #tpu.memory_space<vmem>>, vector<4x8x16xbf16>,
    %c0_10 = arith.constant 0 : index
    %c0_11 = arith.constant 0 : index
    %16 = arith.index_cast %5 : i32 to index
    %c4_12 = arith.constant 4 : index
    %17 = vector.load %arg2[%c0_10, %c0_11, %16, %c4_12] : memref<1x4x22x22xf32, #tpu.memory_space<vmem>>, vector<1x4x8x16xf32>
    %18 = vector.shape_cast %17 : vector<1x4x8x16xf32> to vector<4x8x16xf32>
    %19 = arith.truncf %18 : vector<4x8x16xf32> to vector<4x8x16xbf16>
    %c8 = arith.constant 8 : index
    %c0_13 = arith.constant 0 : index
    %c0_14 = arith.constant 0 : index
    %20 = vector.load %arg5[%c8, %c0_13, %c0_14] : memref<128x8x16xbf16, #tpu.memory_space<vmem>>, vector<4x8x16xbf16>
    tpu.vector_store %arg5[%c8, %c0_13, %c0_14], %19 {strides = array<i32>} : memref<128x8x16xbf16, #tpu.memory_space<vmem>>, vector<4x8x16xbf16>,
    %c2_i32_15 = arith.constant 2 : i32
    %21 = arith.addi %1, %c2_i32_15 : i32
    %c1_i32 = arith.constant 1 : i32
    %22 = arith.addi %21, %c1_i32 : i32
    %c0_16 = arith.constant 0 : index
    %c0_17 = arith.constant 0 : index
    %23 = arith.index_cast %22 : i32 to index
    %c2_18 = arith.constant 2 : index
    %24 = vector.load %arg2[%c0_16, %c0_17, %23, %c2_18] : memref<1x4x22x22xf32, #tpu.memory_space<vmem>>, vector<1x4x8x16xf32>
    %25 = vector.shape_cast %24 : vector<1x4x8x16xf32> to vector<4x8x16xf32>
    %26 = arith.truncf %25 : vector<4x8x16xf32> to vector<4x8x16xbf16>
    %c12 = arith.constant 12 : index
    %c0_19 = arith.constant 0 : index
    %c0_20 = arith.constant 0 : index
    %27 = vector.load %arg5[%c12, %c0_19, %c0_20] : memref<128x8x16xbf16, #tpu.memory_space<vmem>>, vector<4x8x16xbf16>
    tpu.vector_store %arg5[%c12, %c0_19, %c0_20], %26 {strides = array<i32>} : memref<128x8x16xbf16, #tpu.memory_space<vmem>>, vector<4x8x16xbf16>,
    %c0_21 = arith.constant 0 : index
    %c0_22 = arith.constant 0 : index
    %28 = arith.index_cast %22 : i32 to index
    %c3_23 = arith.constant 3 : index
    %29 = vector.load %arg2[%c0_21, %c0_22, %28, %c3_23] : memref<1x4x22x22xf32, #tpu.memory_space<vmem>>, vector<1x4x8x16xf32>
    %30 = vector.shape_cast %29 : vector<1x4x8x16xf32> to vector<4x8x16xf32>
    %31 = arith.truncf %30 : vector<4x8x16xf32> to vector<4x8x16xbf16>
    %c16 = arith.constant 16 : index
    %c0_24 = arith.constant 0 : index
    %c0_25 = arith.constant 0 : index
    %32 = vector.load %arg5[%c16, %c0_24, %c0_25] : memref<128x8x16xbf16, #tpu.memory_space<vmem>>, vector<4x8x16xbf16>
    tpu.vector_store %arg5[%c16, %c0_24, %c0_25], %31 {strides = array<i32>} : memref<128x8x16xbf16, #tpu.memory_space<vmem>>, vector<4x8x16xbf16>,
    %c0_26 = arith.constant 0 : index
    %c0_27 = arith.constant 0 : index
    %33 = arith.index_cast %22 : i32 to index
    %c4_28 = arith.constant 4 : index
    %34 = vector.load %arg2[%c0_26, %c0_27, %33, %c4_28] : memref<1x4x22x22xf32, #tpu.memory_space<vmem>>, vector<1x4x8x16xf32>
    %35 = vector.shape_cast %34 : vector<1x4x8x16xf32> to vector<4x8x16xf32>
    %36 = arith.truncf %35 : vector<4x8x16xf32> to vector<4x8x16xbf16>
    %c20 = arith.constant 20 : index
    %c0_29 = arith.constant 0 : index
    %c0_30 = arith.constant 0 : index
    %37 = vector.load %arg5[%c20, %c0_29, %c0_30] : memref<128x8x16xbf16, #tpu.memory_space<vmem>>, vector<4x8x16xbf16>
    tpu.vector_store %arg5[%c20, %c0_29, %c0_30], %36 {strides = array<i32>} : memref<128x8x16xbf16, #tpu.memory_space<vmem>>, vector<4x8x16xbf16>,
    %c2_i32_31 = arith.constant 2 : i32
    %38 = arith.addi %1, %c2_i32_31 : i32
    %c2_i32_32 = arith.constant 2 : i32
    %39 = arith.addi %38, %c2_i32_32 : i32
    %c0_33 = arith.constant 0 : index
    %c0_34 = arith.constant 0 : index
    %40 = arith.index_cast %39 : i32 to index
    %c2_35 = arith.constant 2 : index
    %41 = vector.load %arg2[%c0_33, %c0_34, %40, %c2_35] : memref<1x4x22x22xf32, #tpu.memory_space<vmem>>, vector<1x4x8x16xf32>
    %42 = vector.shape_cast %41 : vector<1x4x8x16xf32> to vector<4x8x16xf32>
    %43 = arith.truncf %42 : vector<4x8x16xf32> to vector<4x8x16xbf16>
    %c24 = arith.constant 24 : index
    %c0_36 = arith.constant 0 : index
    %c0_37 = arith.constant 0 : index
    %44 = vector.load %arg5[%c24, %c0_36, %c0_37] : memref<128x8x16xbf16, #tpu.memory_space<vmem>>, vector<4x8x16xbf16>
    tpu.vector_store %arg5[%c24, %c0_36, %c0_37], %43 {strides = array<i32>} : memref<128x8x16xbf16, #tpu.memory_space<vmem>>, vector<4x8x16xbf16>,
    %c0_38 = arith.constant 0 : index
    %c0_39 = arith.constant 0 : index
    %45 = arith.index_cast %39 : i32 to index
    %c3_40 = arith.constant 3 : index
    %46 = vector.load %arg2[%c0_38, %c0_39, %45, %c3_40] : memref<1x4x22x22xf32, #tpu.memory_space<vmem>>, vector<1x4x8x16xf32>
    %47 = vector.shape_cast %46 : vector<1x4x8x16xf32> to vector<4x8x16xf32>
    %48 = arith.truncf %47 : vector<4x8x16xf32> to vector<4x8x16xbf16>
    %c28 = arith.constant 28 : index
    %c0_41 = arith.constant 0 : index
    %c0_42 = arith.constant 0 : index
    %49 = vector.load %arg5[%c28, %c0_41, %c0_42] : memref<128x8x16xbf16, #tpu.memory_space<vmem>>, vector<4x8x16xbf16>
    tpu.vector_store %arg5[%c28, %c0_41, %c0_42], %48 {strides = array<i32>} : memref<128x8x16xbf16, #tpu.memory_space<vmem>>, vector<4x8x16xbf16>,
    %c0_43 = arith.constant 0 : index
    %c0_44 = arith.constant 0 : index
    %50 = arith.index_cast %39 : i32 to index
    %c4_45 = arith.constant 4 : index
    %51 = vector.load %arg2[%c0_43, %c0_44, %50, %c4_45] : memref<1x4x22x22xf32, #tpu.memory_space<vmem>>, vector<1x4x8x16xf32>
    %52 = vector.shape_cast %51 : vector<1x4x8x16xf32> to vector<4x8x16xf32>
    %53 = arith.truncf %52 : vector<4x8x16xf32> to vector<4x8x16xbf16>
    %c32 = arith.constant 32 : index
    %c0_46 = arith.constant 0 : index
    %c0_47 = arith.constant 0 : index
    %54 = vector.load %arg5[%c32, %c0_46, %c0_47] : memref<128x8x16xbf16, #tpu.memory_space<vmem>>, vector<4x8x16xbf16>
    tpu.vector_store %arg5[%c32, %c0_46, %c0_47], %53 {strides = array<i32>} : memref<128x8x16xbf16, #tpu.memory_space<vmem>>, vector<4x8x16xbf16>,
    %c1_i32_48 = arith.constant 1 : i32
    %55 = arith.addi %1, %c1_i32_48 : i32
    %c0_i32_49 = arith.constant 0 : i32
    %56 = arith.addi %55, %c0_i32_49 : i32
    %c0_50 = arith.constant 0 : index
    %c0_51 = arith.constant 0 : index
    %57 = arith.index_cast %56 : i32 to index
    %c1 = arith.constant 1 : index
    %58 = vector.load %arg2[%c0_50, %c0_51, %57, %c1] : memref<1x4x22x22xf32, #tpu.memory_space<vmem>>, vector<1x4x8x16xf32>
    %59 = vector.shape_cast %58 : vector<1x4x8x16xf32> to vector<4x8x16xf32>
    %60 = arith.truncf %59 : vector<4x8x16xf32> to vector<4x8x16xbf16>
    %c36 = arith.constant 36 : index
    %c0_52 = arith.constant 0 : index
    %c0_53 = arith.constant 0 : index
    %61 = vector.load %arg5[%c36, %c0_52, %c0_53] : memref<128x8x16xbf16, #tpu.memory_space<vmem>>, vector<4x8x16xbf16>
    tpu.vector_store %arg5[%c36, %c0_52, %c0_53], %60 {strides = array<i32>} : memref<128x8x16xbf16, #tpu.memory_space<vmem>>, vector<4x8x16xbf16>,
    %c0_54 = arith.constant 0 : index
    %c0_55 = arith.constant 0 : index
    %62 = arith.index_cast %56 : i32 to index
    %c3_56 = arith.constant 3 : index
    %63 = vector.load %arg2[%c0_54, %c0_55, %62, %c3_56] : memref<1x4x22x22xf32, #tpu.memory_space<vmem>>, vector<1x4x8x16xf32>
    %64 = vector.shape_cast %63 : vector<1x4x8x16xf32> to vector<4x8x16xf32>
    %65 = arith.truncf %64 : vector<4x8x16xf32> to vector<4x8x16xbf16>
    %c40 = arith.constant 40 : index
    %c0_57 = arith.constant 0 : index
    %c0_58 = arith.constant 0 : index
    %66 = vector.load %arg5[%c40, %c0_57, %c0_58] : memref<128x8x16xbf16, #tpu.memory_space<vmem>>, vector<4x8x16xbf16>
    tpu.vector_store %arg5[%c40, %c0_57, %c0_58], %65 {strides = array<i32>} : memref<128x8x16xbf16, #tpu.memory_space<vmem>>, vector<4x8x16xbf16>,
    %c0_59 = arith.constant 0 : index
    %c0_60 = arith.constant 0 : index
    %67 = arith.index_cast %56 : i32 to index
    %c5 = arith.constant 5 : index
    %68 = vector.load %arg2[%c0_59, %c0_60, %67, %c5] : memref<1x4x22x22xf32, #tpu.memory_space<vmem>>, vector<1x4x8x16xf32>
    %69 = vector.shape_cast %68 : vector<1x4x8x16xf32> to vector<4x8x16xf32>
    %70 = arith.truncf %69 : vector<4x8x16xf32> to vector<4x8x16xbf16>
    %c44 = arith.constant 44 : index
    %c0_61 = arith.constant 0 : index
    %c0_62 = arith.constant 0 : index
    %71 = vector.load %arg5[%c44, %c0_61, %c0_62] : memref<128x8x16xbf16, #tpu.memory_space<vmem>>, vector<4x8x16xbf16>
    tpu.vector_store %arg5[%c44, %c0_61, %c0_62], %70 {strides = array<i32>} : memref<128x8x16xbf16, #tpu.memory_space<vmem>>, vector<4x8x16xbf16>,
    %c1_i32_63 = arith.constant 1 : i32
    %72 = arith.addi %1, %c1_i32_63 : i32
    %c2_i32_64 = arith.constant 2 : i32
    %73 = arith.addi %72, %c2_i32_64 : i32
    %c0_65 = arith.constant 0 : index
    %c0_66 = arith.constant 0 : index
    %74 = arith.index_cast %73 : i32 to index
    %c1_67 = arith.constant 1 : index
    %75 = vector.load %arg2[%c0_65, %c0_66, %74, %c1_67] : memref<1x4x22x22xf32, #tpu.memory_space<vmem>>, vector<1x4x8x16xf32>
    %76 = vector.shape_cast %75 : vector<1x4x8x16xf32> to vector<4x8x16xf32>
    %77 = arith.truncf %76 : vector<4x8x16xf32> to vector<4x8x16xbf16>
    %c48 = arith.constant 48 : index
    %c0_68 = arith.constant 0 : index
    %c0_69 = arith.constant 0 : index
    %78 = vector.load %arg5[%c48, %c0_68, %c0_69] : memref<128x8x16xbf16, #tpu.memory_space<vmem>>, vector<4x8x16xbf16>
    tpu.vector_store %arg5[%c48, %c0_68, %c0_69], %77 {strides = array<i32>} : memref<128x8x16xbf16, #tpu.memory_space<vmem>>, vector<4x8x16xbf16>,
    %c0_70 = arith.constant 0 : index
    %c0_71 = arith.constant 0 : index
    %79 = arith.index_cast %73 : i32 to index
    %c3_72 = arith.constant 3 : index
    %80 = vector.load %arg2[%c0_70, %c0_71, %79, %c3_72] : memref<1x4x22x22xf32, #tpu.memory_space<vmem>>, vector<1x4x8x16xf32>
    %81 = vector.shape_cast %80 : vector<1x4x8x16xf32> to vector<4x8x16xf32>
    %82 = arith.truncf %81 : vector<4x8x16xf32> to vector<4x8x16xbf16>
    %c52 = arith.constant 52 : index
    %c0_73 = arith.constant 0 : index
    %c0_74 = arith.constant 0 : index
    %83 = vector.load %arg5[%c52, %c0_73, %c0_74] : memref<128x8x16xbf16, #tpu.memory_space<vmem>>, vector<4x8x16xbf16>
    tpu.vector_store %arg5[%c52, %c0_73, %c0_74], %82 {strides = array<i32>} : memref<128x8x16xbf16, #tpu.memory_space<vmem>>, vector<4x8x16xbf16>,
    %c0_75 = arith.constant 0 : index
    %c0_76 = arith.constant 0 : index
    %84 = arith.index_cast %73 : i32 to index
    %c5_77 = arith.constant 5 : index
    %85 = vector.load %arg2[%c0_75, %c0_76, %84, %c5_77] : memref<1x4x22x22xf32, #tpu.memory_space<vmem>>, vector<1x4x8x16xf32>
    %86 = vector.shape_cast %85 : vector<1x4x8x16xf32> to vector<4x8x16xf32>
    %87 = arith.truncf %86 : vector<4x8x16xf32> to vector<4x8x16xbf16>
    %c56 = arith.constant 56 : index
    %c0_78 = arith.constant 0 : index
    %c0_79 = arith.constant 0 : index
    %88 = vector.load %arg5[%c56, %c0_78, %c0_79] : memref<128x8x16xbf16, #tpu.memory_space<vmem>>, vector<4x8x16xbf16>
    tpu.vector_store %arg5[%c56, %c0_78, %c0_79], %87 {strides = array<i32>} : memref<128x8x16xbf16, #tpu.memory_space<vmem>>, vector<4x8x16xbf16>,
    %c1_i32_80 = arith.constant 1 : i32
    %89 = arith.addi %1, %c1_i32_80 : i32
    %c4_i32 = arith.constant 4 : i32
    %90 = arith.addi %89, %c4_i32 : i32
    %c0_81 = arith.constant 0 : index
    %c0_82 = arith.constant 0 : index
    %91 = arith.index_cast %90 : i32 to index
    %c1_83 = arith.constant 1 : index
    %92 = vector.load %arg2[%c0_81, %c0_82, %91, %c1_83] : memref<1x4x22x22xf32, #tpu.memory_space<vmem>>, vector<1x4x8x16xf32>
    %93 = vector.shape_cast %92 : vector<1x4x8x16xf32> to vector<4x8x16xf32>
    %94 = arith.truncf %93 : vector<4x8x16xf32> to vector<4x8x16xbf16>
    %c60 = arith.constant 60 : index
    %c0_84 = arith.constant 0 : index
    %c0_85 = arith.constant 0 : index
    %95 = vector.load %arg5[%c60, %c0_84, %c0_85] : memref<128x8x16xbf16, #tpu.memory_space<vmem>>, vector<4x8x16xbf16>
    tpu.vector_store %arg5[%c60, %c0_84, %c0_85], %94 {strides = array<i32>} : memref<128x8x16xbf16, #tpu.memory_space<vmem>>, vector<4x8x16xbf16>,
    %c0_86 = arith.constant 0 : index
    %c0_87 = arith.constant 0 : index
    %96 = arith.index_cast %90 : i32 to index
    %c3_88 = arith.constant 3 : index
    %97 = vector.load %arg2[%c0_86, %c0_87, %96, %c3_88] : memref<1x4x22x22xf32, #tpu.memory_space<vmem>>, vector<1x4x8x16xf32>
    %98 = vector.shape_cast %97 : vector<1x4x8x16xf32> to vector<4x8x16xf32>
    %99 = arith.truncf %98 : vector<4x8x16xf32> to vector<4x8x16xbf16>
    %c64 = arith.constant 64 : index
    %c0_89 = arith.constant 0 : index
    %c0_90 = arith.constant 0 : index
    %100 = vector.load %arg5[%c64, %c0_89, %c0_90] : memref<128x8x16xbf16, #tpu.memory_space<vmem>>, vector<4x8x16xbf16>
    tpu.vector_store %arg5[%c64, %c0_89, %c0_90], %99 {strides = array<i32>} : memref<128x8x16xbf16, #tpu.memory_space<vmem>>, vector<4x8x16xbf16>,
    %c0_91 = arith.constant 0 : index
    %c0_92 = arith.constant 0 : index
    %101 = arith.index_cast %90 : i32 to index
    %c5_93 = arith.constant 5 : index
    %102 = vector.load %arg2[%c0_91, %c0_92, %101, %c5_93] : memref<1x4x22x22xf32, #tpu.memory_space<vmem>>, vector<1x4x8x16xf32>
    %103 = vector.shape_cast %102 : vector<1x4x8x16xf32> to vector<4x8x16xf32>
    %104 = arith.truncf %103 : vector<4x8x16xf32> to vector<4x8x16xbf16>
    %c68 = arith.constant 68 : index
    %c0_94 = arith.constant 0 : index
    %c0_95 = arith.constant 0 : index
    %105 = vector.load %arg5[%c68, %c0_94, %c0_95] : memref<128x8x16xbf16, #tpu.memory_space<vmem>>, vector<4x8x16xbf16>
    tpu.vector_store %arg5[%c68, %c0_94, %c0_95], %104 {strides = array<i32>} : memref<128x8x16xbf16, #tpu.memory_space<vmem>>, vector<4x8x16xbf16>,
    %c0_i32_96 = arith.constant 0 : i32
    %106 = arith.addi %1, %c0_i32_96 : i32
    %c0_i32_97 = arith.constant 0 : i32
    %107 = arith.addi %106, %c0_i32_97 : i32
    %c0_98 = arith.constant 0 : index
    %c0_99 = arith.constant 0 : index
    %108 = arith.index_cast %107 : i32 to index
    %c0_100 = arith.constant 0 : index
    %109 = vector.load %arg2[%c0_98, %c0_99, %108, %c0_100] : memref<1x4x22x22xf32, #tpu.memory_space<vmem>>, vector<1x4x8x16xf32>
    %110 = vector.shape_cast %109 : vector<1x4x8x16xf32> to vector<4x8x16xf32>
    %111 = arith.truncf %110 : vector<4x8x16xf32> to vector<4x8x16xbf16>
    %c72 = arith.constant 72 : index
    %c0_101 = arith.constant 0 : index
    %c0_102 = arith.constant 0 : index
    %112 = vector.load %arg5[%c72, %c0_101, %c0_102] : memref<128x8x16xbf16, #tpu.memory_space<vmem>>, vector<4x8x16xbf16>
    tpu.vector_store %arg5[%c72, %c0_101, %c0_102], %111 {strides = array<i32>} : memref<128x8x16xbf16, #tpu.memory_space<vmem>>, vector<4x8x16xbf16>,
    %c0_103 = arith.constant 0 : index
    %c0_104 = arith.constant 0 : index
    %113 = arith.index_cast %107 : i32 to index
    %c3_105 = arith.constant 3 : index
    %114 = vector.load %arg2[%c0_103, %c0_104, %113, %c3_105] : memref<1x4x22x22xf32, #tpu.memory_space<vmem>>, vector<1x4x8x16xf32>
    %115 = vector.shape_cast %114 : vector<1x4x8x16xf32> to vector<4x8x16xf32>
    %116 = arith.truncf %115 : vector<4x8x16xf32> to vector<4x8x16xbf16>
    %c76 = arith.constant 76 : index
    %c0_106 = arith.constant 0 : index
    %c0_107 = arith.constant 0 : index
    %117 = vector.load %arg5[%c76, %c0_106, %c0_107] : memref<128x8x16xbf16, #tpu.memory_space<vmem>>, vector<4x8x16xbf16>
    tpu.vector_store %arg5[%c76, %c0_106, %c0_107], %116 {strides = array<i32>} : memref<128x8x16xbf16, #tpu.memory_space<vmem>>, vector<4x8x16xbf16>,
    %c0_108 = arith.constant 0 : index
    %c0_109 = arith.constant 0 : index
    %118 = arith.index_cast %107 : i32 to index
    %c6 = arith.constant 6 : index
    %119 = vector.load %arg2[%c0_108, %c0_109, %118, %c6] : memref<1x4x22x22xf32, #tpu.memory_space<vmem>>, vector<1x4x8x16xf32>
    %120 = vector.shape_cast %119 : vector<1x4x8x16xf32> to vector<4x8x16xf32>
    %121 = arith.truncf %120 : vector<4x8x16xf32> to vector<4x8x16xbf16>
    %c80 = arith.constant 80 : index
    %c0_110 = arith.constant 0 : index
    %c0_111 = arith.constant 0 : index
    %122 = vector.load %arg5[%c80, %c0_110, %c0_111] : memref<128x8x16xbf16, #tpu.memory_space<vmem>>, vector<4x8x16xbf16>
    tpu.vector_store %arg5[%c80, %c0_110, %c0_111], %121 {strides = array<i32>} : memref<128x8x16xbf16, #tpu.memory_space<vmem>>, vector<4x8x16xbf16>,
    %c0_i32_112 = arith.constant 0 : i32
    %123 = arith.addi %1, %c0_i32_112 : i32
    %c3_i32 = arith.constant 3 : i32
    %124 = arith.addi %123, %c3_i32 : i32
    %c0_113 = arith.constant 0 : index
    %c0_114 = arith.constant 0 : index
    %125 = arith.index_cast %124 : i32 to index
    %c0_115 = arith.constant 0 : index
    %126 = vector.load %arg2[%c0_113, %c0_114, %125, %c0_115] : memref<1x4x22x22xf32, #tpu.memory_space<vmem>>, vector<1x4x8x16xf32>
    %127 = vector.shape_cast %126 : vector<1x4x8x16xf32> to vector<4x8x16xf32>
    %128 = arith.truncf %127 : vector<4x8x16xf32> to vector<4x8x16xbf16>
    %c84 = arith.constant 84 : index
    %c0_116 = arith.constant 0 : index
    %c0_117 = arith.constant 0 : index
    %129 = vector.load %arg5[%c84, %c0_116, %c0_117] : memref<128x8x16xbf16, #tpu.memory_space<vmem>>, vector<4x8x16xbf16>
    tpu.vector_store %arg5[%c84, %c0_116, %c0_117], %128 {strides = array<i32>} : memref<128x8x16xbf16, #tpu.memory_space<vmem>>, vector<4x8x16xbf16>,
    %c0_118 = arith.constant 0 : index
    %c0_119 = arith.constant 0 : index
    %130 = arith.index_cast %124 : i32 to index
    %c3_120 = arith.constant 3 : index
    %131 = vector.load %arg2[%c0_118, %c0_119, %130, %c3_120] : memref<1x4x22x22xf32, #tpu.memory_space<vmem>>, vector<1x4x8x16xf32>
    %132 = vector.shape_cast %131 : vector<1x4x8x16xf32> to vector<4x8x16xf32>
    %133 = arith.truncf %132 : vector<4x8x16xf32> to vector<4x8x16xbf16>
    %c88 = arith.constant 88 : index
    %c0_121 = arith.constant 0 : index
    %c0_122 = arith.constant 0 : index
    %134 = vector.load %arg5[%c88, %c0_121, %c0_122] : memref<128x8x16xbf16, #tpu.memory_space<vmem>>, vector<4x8x16xbf16>
    tpu.vector_store %arg5[%c88, %c0_121, %c0_122], %133 {strides = array<i32>} : memref<128x8x16xbf16, #tpu.memory_space<vmem>>, vector<4x8x16xbf16>,
    %c0_123 = arith.constant 0 : index
    %c0_124 = arith.constant 0 : index
    %135 = arith.index_cast %124 : i32 to index
    %c6_125 = arith.constant 6 : index
    %136 = vector.load %arg2[%c0_123, %c0_124, %135, %c6_125] : memref<1x4x22x22xf32, #tpu.memory_space<vmem>>, vector<1x4x8x16xf32>
    %137 = vector.shape_cast %136 : vector<1x4x8x16xf32> to vector<4x8x16xf32>
    %138 = arith.truncf %137 : vector<4x8x16xf32> to vector<4x8x16xbf16>
    %c92 = arith.constant 92 : index
    %c0_126 = arith.constant 0 : index
    %c0_127 = arith.constant 0 : index
    %139 = vector.load %arg5[%c92, %c0_126, %c0_127] : memref<128x8x16xbf16, #tpu.memory_space<vmem>>, vector<4x8x16xbf16>
    tpu.vector_store %arg5[%c92, %c0_126, %c0_127], %138 {strides = array<i32>} : memref<128x8x16xbf16, #tpu.memory_space<vmem>>, vector<4x8x16xbf16>,
    %c0_i32_128 = arith.constant 0 : i32
    %140 = arith.addi %1, %c0_i32_128 : i32
    %c6_i32 = arith.constant 6 : i32
    %141 = arith.addi %140, %c6_i32 : i32
    %c0_129 = arith.constant 0 : index
    %c0_130 = arith.constant 0 : index
    %142 = arith.index_cast %141 : i32 to index
    %c0_131 = arith.constant 0 : index
    %143 = vector.load %arg2[%c0_129, %c0_130, %142, %c0_131] : memref<1x4x22x22xf32, #tpu.memory_space<vmem>>, vector<1x4x8x16xf32>
    %144 = vector.shape_cast %143 : vector<1x4x8x16xf32> to vector<4x8x16xf32>
    %145 = arith.truncf %144 : vector<4x8x16xf32> to vector<4x8x16xbf16>
    %c96 = arith.constant 96 : index
    %c0_132 = arith.constant 0 : index
    %c0_133 = arith.constant 0 : index
    %146 = vector.load %arg5[%c96, %c0_132, %c0_133] : memref<128x8x16xbf16, #tpu.memory_space<vmem>>, vector<4x8x16xbf16>
    tpu.vector_store %arg5[%c96, %c0_132, %c0_133], %145 {strides = array<i32>} : memref<128x8x16xbf16, #tpu.memory_space<vmem>>, vector<4x8x16xbf16>,
    %c0_134 = arith.constant 0 : index
    %c0_135 = arith.constant 0 : index
    %147 = arith.index_cast %141 : i32 to index
    %c3_136 = arith.constant 3 : index
    %148 = vector.load %arg2[%c0_134, %c0_135, %147, %c3_136] : memref<1x4x22x22xf32, #tpu.memory_space<vmem>>, vector<1x4x8x16xf32>
    %149 = vector.shape_cast %148 : vector<1x4x8x16xf32> to vector<4x8x16xf32>
    %150 = arith.truncf %149 : vector<4x8x16xf32> to vector<4x8x16xbf16>
    %c100 = arith.constant 100 : index
    %c0_137 = arith.constant 0 : index
    %c0_138 = arith.constant 0 : index
    %151 = vector.load %arg5[%c100, %c0_137, %c0_138] : memref<128x8x16xbf16, #tpu.memory_space<vmem>>, vector<4x8x16xbf16>
    tpu.vector_store %arg5[%c100, %c0_137, %c0_138], %150 {strides = array<i32>} : memref<128x8x16xbf16, #tpu.memory_space<vmem>>, vector<4x8x16xbf16>,
    %c0_139 = arith.constant 0 : index
    %c0_140 = arith.constant 0 : index
    %152 = arith.index_cast %141 : i32 to index
    %c6_141 = arith.constant 6 : index
    %153 = vector.load %arg2[%c0_139, %c0_140, %152, %c6_141] : memref<1x4x22x22xf32, #tpu.memory_space<vmem>>, vector<1x4x8x16xf32>
    %154 = vector.shape_cast %153 : vector<1x4x8x16xf32> to vector<4x8x16xf32>
    %155 = arith.truncf %154 : vector<4x8x16xf32> to vector<4x8x16xbf16>
    %c104 = arith.constant 104 : index
    %c0_142 = arith.constant 0 : index
    %c0_143 = arith.constant 0 : index
    %156 = vector.load %arg5[%c104, %c0_142, %c0_143] : memref<128x8x16xbf16, #tpu.memory_space<vmem>>, vector<4x8x16xbf16>
    tpu.vector_store %arg5[%c104, %c0_142, %c0_143], %155 {strides = array<i32>} : memref<128x8x16xbf16, #tpu.memory_space<vmem>>, vector<4x8x16xbf16>,
    %c0_144 = arith.constant 0 : index
    %c0_145 = arith.constant 0 : index
    %c0_146 = arith.constant 0 : index
    %157 = vector.load %arg5[%c0_144, %c0_145, %c0_146] : memref<128x8x16xbf16, #tpu.memory_space<vmem>>, vector<128x8x16xbf16>
    %158 = vector.shape_cast %157 : vector<128x8x16xbf16> to vector<128x128xbf16>
    %c0_147 = arith.constant 0 : index
    %c0_148 = arith.constant 0 : index
    %159 = vector.load %arg3[%c0_147, %c0_148] : memref<8x128xbf16, #tpu.memory_space<vmem>>, vector<8x128xbf16>
    %cst_149 = arith.constant dense<0.000000e+00> : vector<8x128xf32>
    %160 = tpu.matmul %159, %158, %cst_149 {dimension_numbers = #tpu.dot_dimension_numbers<[1], [0], [0], [1], [0, 0, 1, 1], [], []>} : vector<8x128xbf16>, vector<128x128xbf16>, vector<8x128xf32> -> vector<8x128xf32>
    %161 = vector.shape_cast %160 : vector<8x128xf32> to vector<1x8x128xf32>
    %c0_150 = arith.constant 0 : index
    %c0_151 = arith.constant 0 : index
    %c0_152 = arith.constant 0 : index
    %162 = vector.load %arg4[%c0_150, %c0_151, %c0_152] : memref<1x8x128xf32, #tpu.memory_space<vmem>>, vector<1x8x128xf32>
    tpu.vector_store %arg4[%c0_150, %c0_151, %c0_152], %161 {strides = array<i32>} : memref<1x8x128xf32, #tpu.memory_space<vmem>>, vector<1x8x128xf32>,
    return
  }
  func.func @transform_0(%arg0: i32, %arg1: i32) -> (i32, i32, i32, i32) {
    %c0_i32 = arith.constant 0 : i32
    %c0_i32_0 = arith.constant 0 : i32
    %c0_i32_1 = arith.constant 0 : i32
    %c0_i32_2 = arith.constant 0 : i32
    return %arg0, %c0_i32, %c0_i32_0, %c0_i32_1 : i32, i32, i32, i32
  }
  func.func @transform_1(%arg0: i32, %arg1: i32) -> (i32, i32) {
    %c0_i32 = arith.constant 0 : i32
    %c0_i32_0 = arith.constant 0 : i32
    %c0_i32_1 = arith.constant 0 : i32
    return %c0_i32, %c0_i32_0 : i32, i32
  }
  func.func @transform_2(%arg0: i32, %arg1: i32) -> (i32, i32, i32) {
    %c0_i32 = arith.constant 0 : i32
    %c0_i32_0 = arith.constant 0 : i32
    return %arg0, %c0_i32, %arg1 : i32, i32, i32
  }
}

</mosaic_0001>

<llo_original>
// kernel: tpu_custom_call.1
$region0: #{tpu_custom_call.1}
  #allocation0 [shape = 'u32[]', space=smem, size = 0x4, offset = 0x4, fixed_abs, tag = 'smem constant byte address 0x4 - core index']
  #allocation1 [shape = 'u32[72,128]{1,0:T(1,128)}', space=vmem, size = 0x9000, scoped, tag = 'internal scratch']
  #allocation2 [shape = 'bf16[128,8,16]{2,1,0:T(8,128)(2,1)}', space=vmem, size = 0x40000, scoped, tag = 'scratch operand']
  %s0 = inlined_call_operand.vmem [shape: f32[2,4,22,22], index: 0, kind: input, shape index: {}]
  %s1 = inlined_call_operand.vmem [shape: bf16[8,128], index: 1, kind: input, shape index: {}]
  %s2 = inlined_call_operand.hbm [shape: f32[2,8,256], index: 2, kind: output, shape index: {}]
  %s3 = sld [smem:[#allocation0]]
  $region41: #{tpu_custom_call.1} parent=0
    _
  %s5 = ssub.s32 1, %s3
  %s6 = scalar_select 0, %s5, %s3
  $region1: #{tpu_custom_call.1} parent=0
    #allocation3 [shape = 'u8[8192]{0}', space=vmem, size = 0x2000, scoped, tag = 'output window, operand 0']
    #allocation4 [shape = 's32[2]{0}', space=sflag, size = 0x8, scoped, tag = 'scoped memory for tpu_custom_call.1']
    %7 = vsyncpa [#allocation4], 0
    %s8 = scalar_lea.sflag [#allocation4], 1
    %9 = vsyncpa %s8, 0
    loop: start=0, step=1, limit=6
    $region2: #{tpu_custom_call.1} parent=1 // loop_pre_header
      _
    $region3: #{tpu_custom_call.1} parent=1 // loop_header
      %s11 = sphi 0, %s15
      %p12 = scmp.ge.s32.totalorder %s11, 6
      %s18 = sphi 0, %s30
      %s19 = sphi 0, %s26
      %s20 = sphi 0, %s18
      %s21 = sphi 0, %s19
      %s22 = sphi 0, %s20
      %s23 = sphi 0, %s21
      %s33 = sphi 0, %s35
      %s36 = sphi 0, %s33
      %s37 = sphi 0, %s36
      %s53 = sphi 0, %s37
      %s57 = sphi 0, %s57
      %s59 = sphi 0, %s57
      %s60 = sphi 0, %s59
      %s74 = sphi 0, %s60
      %s82 = sphi 0, %s84
      %s85 = sphi 0, %s82
      %s86 = sphi 0, %s85
      %s102 = sphi 0, %s86
    $region4: #{tpu_custom_call.1} parent=1 // loop_header_branch
      %14 = sbr.rel (%p12) target = $region8
    $region5: #{tpu_custom_call.1} parent=1 // loop_body
      %s16 = ssub.s32 %s11, 1
      %s17 = ssub.s32 %s11, 2
      %s24 = sadd.s32 1, %s19
      %p25 = scmp.ge.s32.totalorder %s24, 2
      %s26 = scalar_select %p25, 0, %s24
      %s27 = sadd.s32 1, %s18
      %s28 = scalar_select %p25, %s27, %s18
      %p29 = scmp.ge.s32.totalorder %s28, 2
      %s30 = scalar_select %p29, 0, %s28
      %s31 = ssub.s32 %s18, %s30
      %p32 = scmp.eq.s32.totalorder %s31, 0
      %s34 = sadd.s32 %s33, 1
      %s35 = scalar_select %p32, %s33, %s34
      %p38 = pneg %p32
      %p39 = scmp.eq.s32.totalorder %s11, 3
      %p40 = por %p38, %p39
      %p41 = scmp.ne.s32.totalorder %s33, %s36
      %p42 = scmp.eq.s32.totalorder %s11, 0
      %p43 = por %p41, %p42
      %p44 = scmp.ne.s32.totalorder %s33, %s36
      %p45 = scmp.eq.s32.totalorder %s16, 3
      %p46 = por %p44, %p45
      %p47 = scmp.ne.s32.totalorder %s36, %s37
      %p48 = scmp.eq.s32.totalorder %s16, 0
      %p49 = por %p47, %p48
      %p50 = scmp.ne.s32.totalorder %s36, %s37
      %p51 = scmp.eq.s32.totalorder %s17, 3
      %p52 = por %p50, %p51
      %p54 = scmp.ne.s32.totalorder %s37, %s53
      %p55 = scmp.eq.s32.totalorder %s17, 0
      %p56 = por %p54, %p55
      %s58 = sadd.s32 %s57, 1
      %p61 = scmp.eq.s32.totalorder %s11, 3
      %p62 = scmp.ne.s32.totalorder %s57, %s59
      %p63 = scmp.eq.s32.totalorder %s11, 0
      %p64 = por %p62, %p63
      %p65 = scmp.ne.s32.totalorder %s57, %s59
      %p66 = scmp.eq.s32.totalorder %s16, 3
      %p67 = por %p65, %p66
      %p68 = scmp.ne.s32.totalorder %s59, %s60
      %p69 = scmp.eq.s32.totalorder %s16, 0
      %p70 = por %p68, %p69
      %p71 = scmp.ne.s32.totalorder %s59, %s60
      %p72 = scmp.eq.s32.totalorder %s17, 3
      %p73 = por %p71, %p72
      %p75 = scmp.ne.s32.totalorder %s60, %s74
      %p76 = scmp.eq.s32.totalorder %s17, 0
      %p77 = por %p75, %p76
      %s78 = ssub.s32 %s18, %s30
      %s79 = ssub.s32 %s19, %s26
      %s80 = sor.u32 %s78, %s79
      %p81 = scmp.eq.s32.totalorder %s80, 0
      %s83 = sadd.s32 %s82, 1
      %s84 = scalar_select %p81, %s82, %s83
      %p87 = pneg %p81
      %p88 = scmp.eq.s32.totalorder %s11, 3
      %p89 = por %p87, %p88
      %p90 = scmp.ne.s32.totalorder %s82, %s85
      %p91 = scmp.eq.s32.totalorder %s11, 0
      %p92 = por %p90, %p91
      %p93 = scmp.ne.s32.totalorder %s82, %s85
      %p94 = scmp.eq.s32.totalorder %s16, 3
      %p95 = por %p93, %p94
      %p96 = scmp.ne.s32.totalorder %s85, %s86
      %p97 = scmp.eq.s32.totalorder %s16, 0
      %p98 = por %p96, %p97
      %p99 = scmp.ne.s32.totalorder %s85, %s86
      %p100 = scmp.eq.s32.totalorder %s17, 3
      %p101 = por %p99, %p100
      %p103 = scmp.ne.s32.totalorder %s86, %s102
      %p104 = scmp.eq.s32.totalorder %s17, 0
      %p105 = por %p103, %p104
      %p106 = scmp.le.s32.totalorder 1, %s11
      %p107 = scmp.lt.s32.totalorder %s11, 5
      %p108 = pnand %p106, %p107
      %p109 = pneg %p108
      // Predicated region
      $region9: #{tpu_custom_call.1} parent=5 // pred_check
        _
      $region10: #{tpu_custom_call.1} parent=5 // pred_check_branch
        %111 = sbr.rel (%p108) target = $region12
      $region11: #{tpu_custom_call.1} parent=5 // pred_region
        %s112 = ssub.s32 %s11, 1
        // Predicated region
        $region13: #{tpu_custom_call.1} parent=11 // pred_check
          %p113 = pneg %p70
        $region14: #{tpu_custom_call.1} parent=11 // pred_check_branch
          %115 = sbr.rel (%p113) target = $region16
        $region15: #{tpu_custom_call.1} parent=11 // pred_region
          _
        $region16: #{tpu_custom_call.1} parent=11 // pred_fallthru
          _
      $region12: #{tpu_custom_call.1} parent=5 // pred_fallthru
        _
      %p116 = scmp.lt.s32.totalorder %s11, 4
      // Predicated region
      $region17: #{tpu_custom_call.1} parent=5 // pred_check
        %p117 = pneg %p116
      $region18: #{tpu_custom_call.1} parent=5 // pred_check_branch
        %119 = sbr.rel (%p117) target = $region20
      $region19: #{tpu_custom_call.1} parent=5 // pred_region
        // Predicated region
        $region21: #{tpu_custom_call.1} parent=19 // pred_check
          %p120 = pneg %p43
        $region22: #{tpu_custom_call.1} parent=19 // pred_check_branch
          %122 = sbr.rel (%p120) target = $region24
        $region23: #{tpu_custom_call.1} parent=19 // pred_region
          %p123 = scmp.lt.s32.totalorder %s18, 1
          %s124 = scalar_select %p123, %s18, 1
          %s125 = smul.addr %s124, 12
          %s126 = smul.addr %s125, 8
          %s127 = scalar_lea.vmem %s0, %s126
        $region24: #{tpu_custom_call.1} parent=19 // pred_fallthru
          _
      $region20: #{tpu_custom_call.1} parent=5 // pred_fallthru
        _
      %p128 = scmp.le.s32.totalorder 1, %s11
      %p129 = scmp.lt.s32.totalorder %s11, 5
      %p130 = pnand %p128, %p129
      %p131 = pneg %p130
      // Predicated region
      $region25: #{tpu_custom_call.1} parent=5 // pred_check
        _
      $region26: #{tpu_custom_call.1} parent=5 // pred_check_branch
        %133 = sbr.rel (%p130) target = $region28
      $region27: #{tpu_custom_call.1} parent=5 // pred_region
        %s134 = ssub.s32 %s11, 1
        %p135 = scmp.lt.s32.totalorder %s20, 1
        %s136 = scalar_select %p135, %s20, 1
        %s137 = smul.addr %s136, 12
        %s138 = smul.addr %s137, 8
        %s139 = scalar_lea.vmem %s0, %s138
        %p140 = pneg %p49
        %p141 = pneg %p46
        %p142 = pneg %p70
        %p143 = pneg %p67
        %p144 = pneg %p98
        %p145 = pneg %p95
        %s146 = sand.u32 %s85, 1
        %s147 = scalar_lea.sflag [#allocation4], %s146
        %s148 = sand.u32 %s85, 1
        %s149 = smul.addr %s148, 8
        %s150 = scalar_lea.vmem [#allocation3], %s149
        %p151 = scmp.lt.s32.totalorder %s20, 1
        %s152 = scalar_select %p151, %s20, 1
        %s153 = smul.addr %s152, 12
        %s154 = smul.addr %s153, 8
        %s155 = scalar_lea.vmem %s0, %s154
        %s157 = smul.u32 %s21, 8
        %s158 = scalar_lea.vmem [#allocation2], 432
        %vm159 = vcmask 125952
        %160 = vst.msk [vmem:[%s158] sm:$0xf] %vm159, 0
        %161 = vst.msk [vmem:[%s158 + $0x4] sm:$0xf] %vm159, 0
        %162 = vst.msk [vmem:[%s158 + $0x8] sm:$0xf] %vm159, 0
        %163 = vst.msk [vmem:[%s158 + $0xc] sm:$0xf] %vm159, 0
        %164 = vst.msk [vmem:[%s158 + $0x10] sm:$0xf] %vm159, 0
        %165 = vst.msk [vmem:[%s158 + $0x14] sm:$0xf] %vm159, 0
        %166 = vst.msk [vmem:[%s158 + $0x18] sm:$0xf] %vm159, 0
        %167 = vst.msk [vmem:[%s158 + $0x1c] sm:$0xf] %vm159, 0
        %168 = vst.msk [vmem:[%s158 + $0x20] sm:$0xf] %vm159, 0
        %169 = vst.msk [vmem:[%s158 + $0x24] sm:$0xf] %vm159, 0
        %170 = vst.msk [vmem:[%s158 + $0x28] sm:$0xf] %vm159, 0
        %171 = vst.msk [vmem:[%s158 + $0x2c] sm:$0xf] %vm159, 0
        %172 = vst.msk [vmem:[%s158 + $0x30] sm:$0xf] %vm159, 0
        %173 = vst.msk [vmem:[%s158 + $0x34] sm:$0xf] %vm159, 0
        %174 = vst.msk [vmem:[%s158 + $0x38] sm:$0xf] %vm159, 0
        %175 = vst.msk [vmem:[%s158 + $0x3c] sm:$0xf] %vm159, 0
        %176 = vst.msk [vmem:[%s158 + $0x40] sm:$0xf] %vm159, 0
        %177 = vst.msk [vmem:[%s158 + $0x44] sm:$0xf] %vm159, 0
        %178 = vst.msk [vmem:[%s158 + $0x48] sm:$0xf] %vm159, 0
        %179 = vst.msk [vmem:[%s158 + $0x4c] sm:$0xf] %vm159, 0
        %s180 = sadd.s32 %s157, 2
        %s181 = scalar_lea.vmem %s155, %s180
        %v182 = vld [vmem:[%s181] sm:$0xff]
        %v183 = vld [vmem:[%s181 + $0x18] sm:$0xff]
        %v184 = vld [vmem:[%s181 + $0x30] sm:$0xff]
        %v185 = vld [vmem:[%s181 + $0x48] sm:$0xff]
        %v186 = vpack.c.bf16 %v182, %v182
        %v187 = vpack.c.bf16 %v183, %v183
        %v188 = vpack.c.bf16 %v184, %v184
        %v189 = vpack.c.bf16 %v185, %v185
        %194 = vrot.lane.b32.xlu0 %v186, 126
        %v195 = vpop.permute.xlu0 %194
        %196 = vrot.lane.b32.xlu0 %v187, 126
        %v197 = vpop.permute.xlu0 %196
        %198 = vrot.lane.b32.xlu0 %v188, 126
        %v199 = vpop.permute.xlu0 %198
        %200 = vrot.lane.b32.xlu0 %v189, 126
        %v201 = vpop.permute.xlu0 %200
        %206 = vst.msk [vmem:[#allocation2] sm:$0xf] %vm159, %v195
        %207 = vst.msk [vmem:[#allocation2 + $0x4] sm:$0xf] %vm159, %v197
        %208 = vst.msk [vmem:[#allocation2 + $0x8] sm:$0xf] %vm159, %v199
        %209 = vst.msk [vmem:[#allocation2 + $0xc] sm:$0xf] %vm159, %v201
        %v210 = vld [vmem:[%s181] sm:$0xff]
        %v211 = vld [vmem:[%s181 + $0x18] sm:$0xff]
        %v212 = vld [vmem:[%s181 + $0x30] sm:$0xff]
        %v213 = vld [vmem:[%s181 + $0x48] sm:$0xff]
        %v214 = vpack.c.bf16 %v210, %v210
        %v215 = vpack.c.bf16 %v211, %v211
        %v216 = vpack.c.bf16 %v212, %v212
        %v217 = vpack.c.bf16 %v213, %v213
        %222 = vrot.lane.b32.xlu0 %v214, 125
        %v223 = vpop.permute.xlu0 %222
        %224 = vrot.lane.b32.xlu0 %v215, 125
        %v225 = vpop.permute.xlu0 %224
        %226 = vrot.lane.b32.xlu0 %v216, 125
        %v227 = vpop.permute.xlu0 %226
        %228 = vrot.lane.b32.xlu0 %v217, 125
        %v229 = vpop.permute.xlu0 %228
        %s234 = scalar_lea.vmem [#allocation2], 16
        %235 = vst.msk [vmem:[%s234] sm:$0xf] %vm159, %v223
        %236 = vst.msk [vmem:[%s234 + $0x4] sm:$0xf] %vm159, %v225
        %237 = vst.msk [vmem:[%s234 + $0x8] sm:$0xf] %vm159, %v227
        %238 = vst.msk [vmem:[%s234 + $0xc] sm:$0xf] %vm159, %v229
        %v239 = vld [vmem:[%s181] sm:$0xff]
        %v240 = vld [vmem:[%s181 + $0x18] sm:$0xff]
        %v241 = vld [vmem:[%s181 + $0x30] sm:$0xff]
        %v242 = vld [vmem:[%s181 + $0x48] sm:$0xff]
        %v243 = vpack.c.bf16 %v239, %v239
        %v244 = vpack.c.bf16 %v240, %v240
        %v245 = vpack.c.bf16 %v241, %v241
        %v246 = vpack.c.bf16 %v242, %v242
        %251 = vrot.lane.b32.xlu0 %v243, 124
        %v252 = vpop.permute.xlu0 %251
        %253 = vrot.lane.b32.xlu0 %v244, 124
        %v254 = vpop.permute.xlu0 %253
        %255 = vrot.lane.b32.xlu0 %v245, 124
        %v256 = vpop.permute.xlu0 %255
        %257 = vrot.lane.b32.xlu0 %v246, 124
        %v258 = vpop.permute.xlu0 %257
        %s263 = scalar_lea.vmem [#allocation2], 32
        %264 = vst.msk [vmem:[%s263] sm:$0xf] %vm159, %v252
        %265 = vst.msk [vmem:[%s263 + $0x4] sm:$0xf] %vm159, %v254
        %266 = vst.msk [vmem:[%s263 + $0x8] sm:$0xf] %vm159, %v256
        %267 = vst.msk [vmem:[%s263 + $0xc] sm:$0xf] %vm159, %v258
        %s268 = sadd.s32 %s157, 3
        %s269 = scalar_lea.vmem %s155, %s268
        %v270 = vld [vmem:[%s269] sm:$0xff]
        %v271 = vld [vmem:[%s269 + $0x18] sm:$0xff]
        %v272 = vld [vmem:[%s269 + $0x30] sm:$0xff]
        %v273 = vld [vmem:[%s269 + $0x48] sm:$0xff]
        %v274 = vpack.c.bf16 %v270, %v270
        %v275 = vpack.c.bf16 %v271, %v271
        %v276 = vpack.c.bf16 %v272, %v272
        %v277 = vpack.c.bf16 %v273, %v273
        %282 = vrot.lane.b32.xlu0 %v274, 126
        %v283 = vpop.permute.xlu0 %282
        %284 = vrot.lane.b32.xlu0 %v275, 126
        %v285 = vpop.permute.xlu0 %284
        %286 = vrot.lane.b32.xlu0 %v276, 126
        %v287 = vpop.permute.xlu0 %286
        %288 = vrot.lane.b32.xlu0 %v277, 126
        %v289 = vpop.permute.xlu0 %288
        %s294 = scalar_lea.vmem [#allocation2], 48
        %295 = vst.msk [vmem:[%s294] sm:$0xf] %vm159, %v283
        %296 = vst.msk [vmem:[%s294 + $0x4] sm:$0xf] %vm159, %v285
        %297 = vst.msk [vmem:[%s294 + $0x8] sm:$0xf] %vm159, %v287
        %298 = vst.msk [vmem:[%s294 + $0xc] sm:$0xf] %vm159, %v289
        %v299 = vld [vmem:[%s269] sm:$0xff]
        %v300 = vld [vmem:[%s269 + $0x18] sm:$0xff]
        %v301 = vld [vmem:[%s269 + $0x30] sm:$0xff]
        %v302 = vld [vmem:[%s269 + $0x48] sm:$0xff]
        %v303 = vpack.c.bf16 %v299, %v299
        %v304 = vpack.c.bf16 %v300, %v300
        %v305 = vpack.c.bf16 %v301, %v301
        %v306 = vpack.c.bf16 %v302, %v302
        %311 = vrot.lane.b32.xlu0 %v303, 125
        %v312 = vpop.permute.xlu0 %311
        %313 = vrot.lane.b32.xlu0 %v304, 125
        %v314 = vpop.permute.xlu0 %313
        %315 = vrot.lane.b32.xlu0 %v305, 125
        %v316 = vpop.permute.xlu0 %315
        %317 = vrot.lane.b32.xlu0 %v306, 125
        %v318 = vpop.permute.xlu0 %317
        %s323 = scalar_lea.vmem [#allocation2], 64
        %324 = vst.msk [vmem:[%s323] sm:$0xf] %vm159, %v312
        %325 = vst.msk [vmem:[%s323 + $0x4] sm:$0xf] %vm159, %v314
        %326 = vst.msk [vmem:[%s323 + $0x8] sm:$0xf] %vm159, %v316
        %327 = vst.msk [vmem:[%s323 + $0xc] sm:$0xf] %vm159, %v318
        %v328 = vld [vmem:[%s269] sm:$0xff]
        %v329 = vld [vmem:[%s269 + $0x18] sm:$0xff]
        %v330 = vld [vmem:[%s269 + $0x30] sm:$0xff]
        %v331 = vld [vmem:[%s269 + $0x48] sm:$0xff]
        %v332 = vpack.c.bf16 %v328, %v328
        %v333 = vpack.c.bf16 %v329, %v329
        %v334 = vpack.c.bf16 %v330, %v330
        %v335 = vpack.c.bf16 %v331, %v331
        %340 = vrot.lane.b32.xlu0 %v332, 124
        %v341 = vpop.permute.xlu0 %340
        %342 = vrot.lane.b32.xlu0 %v333, 124
        %v343 = vpop.permute.xlu0 %342
        %344 = vrot.lane.b32.xlu0 %v334, 124
        %v345 = vpop.permute.xlu0 %344
        %346 = vrot.lane.b32.xlu0 %v335, 124
        %v347 = vpop.permute.xlu0 %346
        %s352 = scalar_lea.vmem [#allocation2], 80
        %353 = vst.msk [vmem:[%s352] sm:$0xf] %vm159, %v341
        %354 = vst.msk [vmem:[%s352 + $0x4] sm:$0xf] %vm159, %v343
        %355 = vst.msk [vmem:[%s352 + $0x8] sm:$0xf] %vm159, %v345
        %356 = vst.msk [vmem:[%s352 + $0xc] sm:$0xf] %vm159, %v347
        %s357 = sadd.s32 %s157, 4
        %s358 = scalar_lea.vmem %s155, %s357
        %v359 = vld [vmem:[%s358] sm:$0xff]
        %v360 = vld [vmem:[%s358 + $0x18] sm:$0xff]
        %v361 = vld [vmem:[%s358 + $0x30] sm:$0xff]
        %v362 = vld [vmem:[%s358 + $0x48] sm:$0xff]
        %v363 = vpack.c.bf16 %v359, %v359
        %v364 = vpack.c.bf16 %v360, %v360
        %v365 = vpack.c.bf16 %v361, %v361
        %v366 = vpack.c.bf16 %v362, %v362
        %371 = vrot.lane.b32.xlu0 %v363, 126
        %v372 = vpop.permute.xlu0 %371
        %373 = vrot.lane.b32.xlu0 %v364, 126
        %v374 = vpop.permute.xlu0 %373
        %375 = vrot.lane.b32.xlu0 %v365, 126
        %v376 = vpop.permute.xlu0 %375
        %377 = vrot.lane.b32.xlu0 %v366, 126
        %v378 = vpop.permute.xlu0 %377
        %s383 = scalar_lea.vmem [#allocation2], 96
        %384 = vst.msk [vmem:[%s383] sm:$0xf] %vm159, %v372
        %385 = vst.msk [vmem:[%s383 + $0x4] sm:$0xf] %vm159, %v374
        %386 = vst.msk [vmem:[%s383 + $0x8] sm:$0xf] %vm159, %v376
        %387 = vst.msk [vmem:[%s383 + $0xc] sm:$0xf] %vm159, %v378
        %v388 = vld [vmem:[%s358] sm:$0xff]
        %v389 = vld [vmem:[%s358 + $0x18] sm:$0xff]
        %v390 = vld [vmem:[%s358 + $0x30] sm:$0xff]
        %v391 = vld [vmem:[%s358 + $0x48] sm:$0xff]
        %v392 = vpack.c.bf16 %v388, %v388
        %v393 = vpack.c.bf16 %v389, %v389
        %v394 = vpack.c.bf16 %v390, %v390
        %v395 = vpack.c.bf16 %v391, %v391
        %400 = vrot.lane.b32.xlu0 %v392, 125
        %v401 = vpop.permute.xlu0 %400
        %402 = vrot.lane.b32.xlu0 %v393, 125
        %v403 = vpop.permute.xlu0 %402
        %404 = vrot.lane.b32.xlu0 %v394, 125
        %v405 = vpop.permute.xlu0 %404
        %406 = vrot.lane.b32.xlu0 %v395, 125
        %v407 = vpop.permute.xlu0 %406
        %s412 = scalar_lea.vmem [#allocation2], 112
        %413 = vst.msk [vmem:[%s412] sm:$0xf] %vm159, %v401
        %414 = vst.msk [vmem:[%s412 + $0x4] sm:$0xf] %vm159, %v403
        %415 = vst.msk [vmem:[%s412 + $0x8] sm:$0xf] %vm159, %v405
        %416 = vst.msk [vmem:[%s412 + $0xc] sm:$0xf] %vm159, %v407
        %v417 = vld [vmem:[%s358] sm:$0xff]
        %v418 = vld [vmem:[%s358 + $0x18] sm:$0xff]
        %v419 = vld [vmem:[%s358 + $0x30] sm:$0xff]
        %v420 = vld [vmem:[%s358 + $0x48] sm:$0xff]
        %v421 = vpack.c.bf16 %v417, %v417
        %v422 = vpack.c.bf16 %v418, %v418
        %v423 = vpack.c.bf16 %v419, %v419
        %v424 = vpack.c.bf16 %v420, %v420
        %429 = vrot.lane.b32.xlu0 %v421, 124
        %v430 = vpop.permute.xlu0 %429
        %431 = vrot.lane.b32.xlu0 %v422, 124
        %v432 = vpop.permute.xlu0 %431
        %433 = vrot.lane.b32.xlu0 %v423, 124
        %v434 = vpop.permute.xlu0 %433
        %435 = vrot.lane.b32.xlu0 %v424, 124
        %v436 = vpop.permute.xlu0 %435
        %s441 = scalar_lea.vmem [#allocation2], 128
        %442 = vst.msk [vmem:[%s441] sm:$0xf] %vm159, %v430
        %443 = vst.msk [vmem:[%s441 + $0x4] sm:$0xf] %vm159, %v432
        %444 = vst.msk [vmem:[%s441 + $0x8] sm:$0xf] %vm159, %v434
        %445 = vst.msk [vmem:[%s441 + $0xc] sm:$0xf] %vm159, %v436
        %s446 = sadd.s32 %s157, 1
        %s447 = scalar_lea.vmem %s155, %s446
        %v448 = vld [vmem:[%s447] sm:$0xff]
        %v449 = vld [vmem:[%s447 + $0x18] sm:$0xff]
        %v450 = vld [vmem:[%s447 + $0x30] sm:$0xff]
        %v451 = vld [vmem:[%s447 + $0x48] sm:$0xff]
        %v452 = vpack.c.bf16 %v448, %v448
        %v453 = vpack.c.bf16 %v449, %v449
        %v454 = vpack.c.bf16 %v450, %v450
        %v455 = vpack.c.bf16 %v451, %v451
        %460 = vrot.lane.b32.xlu0 %v452, 127
        %v461 = vpop.permute.xlu0 %460
        %462 = vrot.lane.b32.xlu0 %v453, 127
        %v463 = vpop.permute.xlu0 %462
        %464 = vrot.lane.b32.xlu0 %v454, 127
        %v465 = vpop.permute.xlu0 %464
        %466 = vrot.lane.b32.xlu0 %v455, 127
        %v467 = vpop.permute.xlu0 %466
        %s472 = scalar_lea.vmem [#allocation2], 144
        %473 = vst.msk [vmem:[%s472] sm:$0xf] %vm159, %v461
        %474 = vst.msk [vmem:[%s472 + $0x4] sm:$0xf] %vm159, %v463
        %475 = vst.msk [vmem:[%s472 + $0x8] sm:$0xf] %vm159, %v465
        %476 = vst.msk [vmem:[%s472 + $0xc] sm:$0xf] %vm159, %v467
        %v477 = vld [vmem:[%s447] sm:$0xff]
        %v478 = vld [vmem:[%s447 + $0x18] sm:$0xff]
        %v479 = vld [vmem:[%s447 + $0x30] sm:$0xff]
        %v480 = vld [vmem:[%s447 + $0x48] sm:$0xff]
        %v481 = vpack.c.bf16 %v477, %v477
        %v482 = vpack.c.bf16 %v478, %v478
        %v483 = vpack.c.bf16 %v479, %v479
        %v484 = vpack.c.bf16 %v480, %v480
        %489 = vrot.lane.b32.xlu0 %v481, 125
        %v490 = vpop.permute.xlu0 %489
        %491 = vrot.lane.b32.xlu0 %v482, 125
        %v492 = vpop.permute.xlu0 %491
        %493 = vrot.lane.b32.xlu0 %v483, 125
        %v494 = vpop.permute.xlu0 %493
        %495 = vrot.lane.b32.xlu0 %v484, 125
        %v496 = vpop.permute.xlu0 %495
        %s501 = scalar_lea.vmem [#allocation2], 160
        %502 = vst.msk [vmem:[%s501] sm:$0xf] %vm159, %v490
        %503 = vst.msk [vmem:[%s501 + $0x4] sm:$0xf] %vm159, %v492
        %504 = vst.msk [vmem:[%s501 + $0x8] sm:$0xf] %vm159, %v494
        %505 = vst.msk [vmem:[%s501 + $0xc] sm:$0xf] %vm159, %v496
        %v506 = vld [vmem:[%s447] sm:$0xff]
        %v507 = vld [vmem:[%s447 + $0x18] sm:$0xff]
        %v508 = vld [vmem:[%s447 + $0x30] sm:$0xff]
        %v509 = vld [vmem:[%s447 + $0x48] sm:$0xff]
        %v510 = vpack.c.bf16 %v506, %v506
        %v511 = vpack.c.bf16 %v507, %v507
        %v512 = vpack.c.bf16 %v508, %v508
        %v513 = vpack.c.bf16 %v509, %v509
        %518 = vrot.lane.b32.xlu0 %v510, 123
        %v519 = vpop.permute.xlu0 %518
        %520 = vrot.lane.b32.xlu0 %v511, 123
        %v521 = vpop.permute.xlu0 %520
        %522 = vrot.lane.b32.xlu0 %v512, 123
        %v523 = vpop.permute.xlu0 %522
        %524 = vrot.lane.b32.xlu0 %v513, 123
        %v525 = vpop.permute.xlu0 %524
        %s530 = scalar_lea.vmem [#allocation2], 176
        %531 = vst.msk [vmem:[%s530] sm:$0xf] %vm159, %v519
        %532 = vst.msk [vmem:[%s530 + $0x4] sm:$0xf] %vm159, %v521
        %533 = vst.msk [vmem:[%s530 + $0x8] sm:$0xf] %vm159, %v523
        %534 = vst.msk [vmem:[%s530 + $0xc] sm:$0xf] %vm159, %v525
        %v535 = vld [vmem:[%s269] sm:$0xff]
        %v536 = vld [vmem:[%s269 + $0x18] sm:$0xff]
        %v537 = vld [vmem:[%s269 + $0x30] sm:$0xff]
        %v538 = vld [vmem:[%s269 + $0x48] sm:$0xff]
        %v539 = vpack.c.bf16 %v535, %v535
        %v540 = vpack.c.bf16 %v536, %v536
        %v541 = vpack.c.bf16 %v537, %v537
        %v542 = vpack.c.bf16 %v538, %v538
        %547 = vrot.lane.b32.xlu0 %v539, 127
        %v548 = vpop.permute.xlu0 %547
        %549 = vrot.lane.b32.xlu0 %v540, 127
        %v550 = vpop.permute.xlu0 %549
        %551 = vrot.lane.b32.xlu0 %v541, 127
        %v552 = vpop.permute.xlu0 %551
        %553 = vrot.lane.b32.xlu0 %v542, 127
        %v554 = vpop.permute.xlu0 %553
        %s559 = scalar_lea.vmem [#allocation2], 192
        %560 = vst.msk [vmem:[%s559] sm:$0xf] %vm159, %v548
        %561 = vst.msk [vmem:[%s559 + $0x4] sm:$0xf] %vm159, %v550
        %562 = vst.msk [vmem:[%s559 + $0x8] sm:$0xf] %vm159, %v552
        %563 = vst.msk [vmem:[%s559 + $0xc] sm:$0xf] %vm159, %v554
        %v564 = vld [vmem:[%s269] sm:$0xff]
        %v565 = vld [vmem:[%s269 + $0x18] sm:$0xff]
        %v566 = vld [vmem:[%s269 + $0x30] sm:$0xff]
        %v567 = vld [vmem:[%s269 + $0x48] sm:$0xff]
        %v568 = vpack.c.bf16 %v564, %v564
        %v569 = vpack.c.bf16 %v565, %v565
        %v570 = vpack.c.bf16 %v566, %v566
        %v571 = vpack.c.bf16 %v567, %v567
        %576 = vrot.lane.b32.xlu0 %v568, 125
        %v577 = vpop.permute.xlu0 %576
        %578 = vrot.lane.b32.xlu0 %v569, 125
        %v579 = vpop.permute.xlu0 %578
        %580 = vrot.lane.b32.xlu0 %v570, 125
        %v581 = vpop.permute.xlu0 %580
        %582 = vrot.lane.b32.xlu0 %v571, 125
        %v583 = vpop.permute.xlu0 %582
        %s588 = scalar_lea.vmem [#allocation2], 208
        %589 = vst.msk [vmem:[%s588] sm:$0xf] %vm159, %v577
        %590 = vst.msk [vmem:[%s588 + $0x4] sm:$0xf] %vm159, %v579
        %591 = vst.msk [vmem:[%s588 + $0x8] sm:$0xf] %vm159, %v581
        %592 = vst.msk [vmem:[%s588 + $0xc] sm:$0xf] %vm159, %v583
        %v593 = vld [vmem:[%s269] sm:$0xff]
        %v594 = vld [vmem:[%s269 + $0x18] sm:$0xff]
        %v595 = vld [vmem:[%s269 + $0x30] sm:$0xff]
        %v596 = vld [vmem:[%s269 + $0x48] sm:$0xff]
        %v597 = vpack.c.bf16 %v593, %v593
        %v598 = vpack.c.bf16 %v594, %v594
        %v599 = vpack.c.bf16 %v595, %v595
        %v600 = vpack.c.bf16 %v596, %v596
        %605 = vrot.lane.b32.xlu0 %v597, 123
        %v606 = vpop.permute.xlu0 %605
        %607 = vrot.lane.b32.xlu0 %v598, 123
        %v608 = vpop.permute.xlu0 %607
        %609 = vrot.lane.b32.xlu0 %v599, 123
        %v610 = vpop.permute.xlu0 %609
        %611 = vrot.lane.b32.xlu0 %v600, 123
        %v612 = vpop.permute.xlu0 %611
        %s617 = scalar_lea.vmem [#allocation2], 224
        %618 = vst.msk [vmem:[%s617] sm:$0xf] %vm159, %v606
        %619 = vst.msk [vmem:[%s617 + $0x4] sm:$0xf] %vm159, %v608
        %620 = vst.msk [vmem:[%s617 + $0x8] sm:$0xf] %vm159, %v610
        %621 = vst.msk [vmem:[%s617 + $0xc] sm:$0xf] %vm159, %v612
        %s622 = sadd.s32 %s157, 5
        %s623 = scalar_lea.vmem %s155, %s622
        %v624 = vld [vmem:[%s623] sm:$0xff]
        %v625 = vld [vmem:[%s623 + $0x18] sm:$0xff]
        %v626 = vld [vmem:[%s623 + $0x30] sm:$0xff]
        %v627 = vld [vmem:[%s623 + $0x48] sm:$0xff]
        %v628 = vpack.c.bf16 %v624, %v624
        %v629 = vpack.c.bf16 %v625, %v625
        %v630 = vpack.c.bf16 %v626, %v626
        %v631 = vpack.c.bf16 %v627, %v627
        %636 = vrot.lane.b32.xlu0 %v628, 127
        %v637 = vpop.permute.xlu0 %636
        %638 = vrot.lane.b32.xlu0 %v629, 127
        %v639 = vpop.permute.xlu0 %638
        %640 = vrot.lane.b32.xlu0 %v630, 127
        %v641 = vpop.permute.xlu0 %640
        %642 = vrot.lane.b32.xlu0 %v631, 127
        %v643 = vpop.permute.xlu0 %642
        %s648 = scalar_lea.vmem [#allocation2], 240
        %649 = vst.msk [vmem:[%s648] sm:$0xf] %vm159, %v637
        %650 = vst.msk [vmem:[%s648 + $0x4] sm:$0xf] %vm159, %v639
        %651 = vst.msk [vmem:[%s648 + $0x8] sm:$0xf] %vm159, %v641
        %652 = vst.msk [vmem:[%s648 + $0xc] sm:$0xf] %vm159, %v643
        %v653 = vld [vmem:[%s623] sm:$0xff]
        %v654 = vld [vmem:[%s623 + $0x18] sm:$0xff]
        %v655 = vld [vmem:[%s623 + $0x30] sm:$0xff]
        %v656 = vld [vmem:[%s623 + $0x48] sm:$0xff]
        %v657 = vpack.c.bf16 %v653, %v653
        %v658 = vpack.c.bf16 %v654, %v654
        %v659 = vpack.c.bf16 %v655, %v655
        %v660 = vpack.c.bf16 %v656, %v656
        %665 = vrot.lane.b32.xlu0 %v657, 125
        %v666 = vpop.permute.xlu0 %665
        %667 = vrot.lane.b32.xlu0 %v658, 125
        %v668 = vpop.permute.xlu0 %667
        %669 = vrot.lane.b32.xlu0 %v659, 125
        %v670 = vpop.permute.xlu0 %669
        %671 = vrot.lane.b32.xlu0 %v660, 125
        %v672 = vpop.permute.xlu0 %671
        %s677 = scalar_lea.vmem [#allocation2], 256
        %678 = vst.msk [vmem:[%s677] sm:$0xf] %vm159, %v666
        %679 = vst.msk [vmem:[%s677 + $0x4] sm:$0xf] %vm159, %v668
        %680 = vst.msk [vmem:[%s677 + $0x8] sm:$0xf] %vm159, %v670
        %681 = vst.msk [vmem:[%s677 + $0xc] sm:$0xf] %vm159, %v672
        %v682 = vld [vmem:[%s623] sm:$0xff]
        %v683 = vld [vmem:[%s623 + $0x18] sm:$0xff]
        %v684 = vld [vmem:[%s623 + $0x30] sm:$0xff]
        %v685 = vld [vmem:[%s623 + $0x48] sm:$0xff]
        %v686 = vpack.c.bf16 %v682, %v682
        %v687 = vpack.c.bf16 %v683, %v683
        %v688 = vpack.c.bf16 %v684, %v684
        %v689 = vpack.c.bf16 %v685, %v685
        %694 = vrot.lane.b32.xlu0 %v686, 123
        %v695 = vpop.permute.xlu0 %694
        %696 = vrot.lane.b32.xlu0 %v687, 123
        %v697 = vpop.permute.xlu0 %696
        %698 = vrot.lane.b32.xlu0 %v688, 123
        %v699 = vpop.permute.xlu0 %698
        %700 = vrot.lane.b32.xlu0 %v689, 123
        %v701 = vpop.permute.xlu0 %700
        %s706 = scalar_lea.vmem [#allocation2], 272
        %707 = vst.msk [vmem:[%s706] sm:$0xf] %vm159, %v695
        %708 = vst.msk [vmem:[%s706 + $0x4] sm:$0xf] %vm159, %v697
        %709 = vst.msk [vmem:[%s706 + $0x8] sm:$0xf] %vm159, %v699
        %710 = vst.msk [vmem:[%s706 + $0xc] sm:$0xf] %vm159, %v701
        %s711 = scalar_lea.vmem %s155, %s157
        %v712 = vld [vmem:[%s711] sm:$0xff]
        %v713 = vld [vmem:[%s711 + $0x18] sm:$0xff]
        %v714 = vld [vmem:[%s711 + $0x30] sm:$0xff]
        %v715 = vld [vmem:[%s711 + $0x48] sm:$0xff]
        %v716 = vpack.c.bf16 %v712, %v712
        %v717 = vpack.c.bf16 %v713, %v713
        %v718 = vpack.c.bf16 %v714, %v714
        %v719 = vpack.c.bf16 %v715, %v715
        %s720 = scalar_lea.vmem [#allocation2], 288
        %721 = vst.msk [vmem:[%s720] sm:$0xf] %vm159, %v716
        %722 = vst.msk [vmem:[%s720 + $0x4] sm:$0xf] %vm159, %v717
        %723 = vst.msk [vmem:[%s720 + $0x8] sm:$0xf] %vm159, %v718
        %724 = vst.msk [vmem:[%s720 + $0xc] sm:$0xf] %vm159, %v719
        %v725 = vld [vmem:[%s711] sm:$0xff]
        %v726 = vld [vmem:[%s711 + $0x18] sm:$0xff]
        %v727 = vld [vmem:[%s711 + $0x30] sm:$0xff]
        %v728 = vld [vmem:[%s711 + $0x48] sm:$0xff]
        %v729 = vpack.c.bf16 %v725, %v725
        %v730 = vpack.c.bf16 %v726, %v726
        %v731 = vpack.c.bf16 %v727, %v727
        %v732 = vpack.c.bf16 %v728, %v728
        %737 = vrot.lane.b32.xlu0 %v729, 125
        %v738 = vpop.permute.xlu0 %737
        %739 = vrot.lane.b32.xlu0 %v730, 125
        %v740 = vpop.permute.xlu0 %739
        %741 = vrot.lane.b32.xlu0 %v731, 125
        %v742 = vpop.permute.xlu0 %741
        %743 = vrot.lane.b32.xlu0 %v732, 125
        %v744 = vpop.permute.xlu0 %743
        %s749 = scalar_lea.vmem [#allocation2], 304
        %750 = vst.msk [vmem:[%s749] sm:$0xf] %vm159, %v738
        %751 = vst.msk [vmem:[%s749 + $0x4] sm:$0xf] %vm159, %v740
        %752 = vst.msk [vmem:[%s749 + $0x8] sm:$0xf] %vm159, %v742
        %753 = vst.msk [vmem:[%s749 + $0xc] sm:$0xf] %vm159, %v744
        %v754 = vld [vmem:[%s711] sm:$0xff]
        %v755 = vld [vmem:[%s711 + $0x18] sm:$0xff]
        %v756 = vld [vmem:[%s711 + $0x30] sm:$0xff]
        %v757 = vld [vmem:[%s711 + $0x48] sm:$0xff]
        %v758 = vpack.c.bf16 %v754, %v754
        %v759 = vpack.c.bf16 %v755, %v755
        %v760 = vpack.c.bf16 %v756, %v756
        %v761 = vpack.c.bf16 %v757, %v757
        %766 = vrot.lane.b32.xlu0 %v758, 122
        %v767 = vpop.permute.xlu0 %766
        %768 = vrot.lane.b32.xlu0 %v759, 122
        %v769 = vpop.permute.xlu0 %768
        %770 = vrot.lane.b32.xlu0 %v760, 122
        %v771 = vpop.permute.xlu0 %770
        %772 = vrot.lane.b32.xlu0 %v761, 122
        %v773 = vpop.permute.xlu0 %772
        %s778 = scalar_lea.vmem [#allocation2], 320
        %779 = vst.msk [vmem:[%s778] sm:$0xf] %vm159, %v767
        %780 = vst.msk [vmem:[%s778 + $0x4] sm:$0xf] %vm159, %v769
        %781 = vst.msk [vmem:[%s778 + $0x8] sm:$0xf] %vm159, %v771
        %782 = vst.msk [vmem:[%s778 + $0xc] sm:$0xf] %vm159, %v773
        %v783 = vld [vmem:[%s269] sm:$0xff]
        %v784 = vld [vmem:[%s269 + $0x18] sm:$0xff]
        %v785 = vld [vmem:[%s269 + $0x30] sm:$0xff]
        %v786 = vld [vmem:[%s269 + $0x48] sm:$0xff]
        %v787 = vpack.c.bf16 %v783, %v783
        %v788 = vpack.c.bf16 %v784, %v784
        %v789 = vpack.c.bf16 %v785, %v785
        %v790 = vpack.c.bf16 %v786, %v786
        %s791 = scalar_lea.vmem [#allocation2], 336
        %792 = vst.msk [vmem:[%s791] sm:$0xf] %vm159, %v787
        %793 = vst.msk [vmem:[%s791 + $0x4] sm:$0xf] %vm159, %v788
        %794 = vst.msk [vmem:[%s791 + $0x8] sm:$0xf] %vm159, %v789
        %795 = vst.msk [vmem:[%s791 + $0xc] sm:$0xf] %vm159, %v790
        %v796 = vld [vmem:[%s269] sm:$0xff]
        %v797 = vld [vmem:[%s269 + $0x18] sm:$0xff]
        %v798 = vld [vmem:[%s269 + $0x30] sm:$0xff]
        %v799 = vld [vmem:[%s269 + $0x48] sm:$0xff]
        %v800 = vpack.c.bf16 %v796, %v796
        %v801 = vpack.c.bf16 %v797, %v797
        %v802 = vpack.c.bf16 %v798, %v798
        %v803 = vpack.c.bf16 %v799, %v799
        %808 = vrot.lane.b32.xlu0 %v800, 125
        %v809 = vpop.permute.xlu0 %808
        %810 = vrot.lane.b32.xlu0 %v801, 125
        %v811 = vpop.permute.xlu0 %810
        %812 = vrot.lane.b32.xlu0 %v802, 125
        %v813 = vpop.permute.xlu0 %812
        %814 = vrot.lane.b32.xlu0 %v803, 125
        %v815 = vpop.permute.xlu0 %814
        %s820 = scalar_lea.vmem [#allocation2], 352
        %821 = vst.msk [vmem:[%s820] sm:$0xf] %vm159, %v809
        %822 = vst.msk [vmem:[%s820 + $0x4] sm:$0xf] %vm159, %v811
        %823 = vst.msk [vmem:[%s820 + $0x8] sm:$0xf] %vm159, %v813
        %824 = vst.msk [vmem:[%s820 + $0xc] sm:$0xf] %vm159, %v815
        %v825 = vld [vmem:[%s269] sm:$0xff]
        %v826 = vld [vmem:[%s269 + $0x18] sm:$0xff]
        %v827 = vld [vmem:[%s269 + $0x30] sm:$0xff]
        %v828 = vld [vmem:[%s269 + $0x48] sm:$0xff]
        %v829 = vpack.c.bf16 %v825, %v825
        %v830 = vpack.c.bf16 %v826, %v826
        %v831 = vpack.c.bf16 %v827, %v827
        %v832 = vpack.c.bf16 %v828, %v828
        %837 = vrot.lane.b32.xlu0 %v829, 122
        %v838 = vpop.permute.xlu0 %837
        %839 = vrot.lane.b32.xlu0 %v830, 122
        %v840 = vpop.permute.xlu0 %839
        %841 = vrot.lane.b32.xlu0 %v831, 122
        %v842 = vpop.permute.xlu0 %841
        %843 = vrot.lane.b32.xlu0 %v832, 122
        %v844 = vpop.permute.xlu0 %843
        %s849 = scalar_lea.vmem [#allocation2], 368
        %850 = vst.msk [vmem:[%s849] sm:$0xf] %vm159, %v838
        %851 = vst.msk [vmem:[%s849 + $0x4] sm:$0xf] %vm159, %v840
        %852 = vst.msk [vmem:[%s849 + $0x8] sm:$0xf] %vm159, %v842
        %853 = vst.msk [vmem:[%s849 + $0xc] sm:$0xf] %vm159, %v844
        %s854 = sadd.s32 %s157, 6
        %s855 = scalar_lea.vmem %s155, %s854
        %v856 = vld [vmem:[%s855] sm:$0xff]
        %v857 = vld [vmem:[%s855 + $0x18] sm:$0xff]
        %v858 = vld [vmem:[%s855 + $0x30] sm:$0xff]
        %v859 = vld [vmem:[%s855 + $0x48] sm:$0xff]
        %v860 = vpack.c.bf16 %v856, %v856
        %v861 = vpack.c.bf16 %v857, %v857
        %v862 = vpack.c.bf16 %v858, %v858
        %v863 = vpack.c.bf16 %v859, %v859
        %s864 = scalar_lea.vmem [#allocation2], 384
        %865 = vst.msk [vmem:[%s864] sm:$0xf] %vm159, %v860
        %866 = vst.msk [vmem:[%s864 + $0x4] sm:$0xf] %vm159, %v861
        %867 = vst.msk [vmem:[%s864 + $0x8] sm:$0xf] %vm159, %v862
        %868 = vst.msk [vmem:[%s864 + $0xc] sm:$0xf] %vm159, %v863
        %v869 = vld [vmem:[%s855] sm:$0xff]
        %v870 = vld [vmem:[%s855 + $0x18] sm:$0xff]
        %v871 = vld [vmem:[%s855 + $0x30] sm:$0xff]
        %v872 = vld [vmem:[%s855 + $0x48] sm:$0xff]
        %v873 = vpack.c.bf16 %v869, %v869
        %v874 = vpack.c.bf16 %v870, %v870
        %v875 = vpack.c.bf16 %v871, %v871
        %v876 = vpack.c.bf16 %v872, %v872
        %881 = vrot.lane.b32.xlu0 %v873, 125
        %v882 = vpop.permute.xlu0 %881
        %883 = vrot.lane.b32.xlu0 %v874, 125
        %v884 = vpop.permute.xlu0 %883
        %885 = vrot.lane.b32.xlu0 %v875, 125
        %v886 = vpop.permute.xlu0 %885
        %887 = vrot.lane.b32.xlu0 %v876, 125
        %v888 = vpop.permute.xlu0 %887
        %s893 = scalar_lea.vmem [#allocation2], 400
        %894 = vst.msk [vmem:[%s893] sm:$0xf] %vm159, %v882
        %895 = vst.msk [vmem:[%s893 + $0x4] sm:$0xf] %vm159, %v884
        %896 = vst.msk [vmem:[%s893 + $0x8] sm:$0xf] %vm159, %v886
        %897 = vst.msk [vmem:[%s893 + $0xc] sm:$0xf] %vm159, %v888
        %v898 = vld [vmem:[%s855] sm:$0xff]
        %v899 = vld [vmem:[%s855 + $0x18] sm:$0xff]
        %v900 = vld [vmem:[%s855 + $0x30] sm:$0xff]
        %v901 = vld [vmem:[%s855 + $0x48] sm:$0xff]
        %v902 = vpack.c.bf16 %v898, %v898
        %v903 = vpack.c.bf16 %v899, %v899
        %v904 = vpack.c.bf16 %v900, %v900
        %v905 = vpack.c.bf16 %v901, %v901
        %910 = vrot.lane.b32.xlu0 %v902, 122
        %v911 = vpop.permute.xlu0 %910
        %912 = vrot.lane.b32.xlu0 %v903, 122
        %v913 = vpop.permute.xlu0 %912
        %914 = vrot.lane.b32.xlu0 %v904, 122
        %v915 = vpop.permute.xlu0 %914
        %916 = vrot.lane.b32.xlu0 %v905, 122
        %v917 = vpop.permute.xlu0 %916
        %s922 = scalar_lea.vmem [#allocation2], 416
        %923 = vst.msk [vmem:[%s922] sm:$0xf] %vm159, %v911
        %924 = vst.msk [vmem:[%s922 + $0x4] sm:$0xf] %vm159, %v913
        %925 = vst.msk [vmem:[%s922 + $0x8] sm:$0xf] %vm159, %v915
        %926 = vst.msk [vmem:[%s922 + $0xc] sm:$0xf] %vm159, %v917
        %v927 = vld [vmem:[#allocation2] sm:$0xf]
        %v928 = vld [vmem:[#allocation2 + $0x4] sm:$0xf]
        %v929 = vld [vmem:[#allocation2 + $0x8] sm:$0xf]
        %v930 = vld [vmem:[#allocation2 + $0xc] sm:$0xf]
        %v931 = vld [vmem:[#allocation2 + $0x10] sm:$0xf]
        %v932 = vld [vmem:[#allocation2 + $0x14] sm:$0xf]
        %v933 = vld [vmem:[#allocation2 + $0x18] sm:$0xf]
        %v934 = vld [vmem:[#allocation2 + $0x1c] sm:$0xf]
        %v935 = vld [vmem:[#allocation2 + $0x20] sm:$0xf]
        %v936 = vld [vmem:[#allocation2 + $0x24] sm:$0xf]
        %v937 = vld [vmem:[#allocation2 + $0x28] sm:$0xf]
        %v938 = vld [vmem:[#allocation2 + $0x2c] sm:$0xf]
        %v939 = vld [vmem:[#allocation2 + $0x30] sm:$0xf]
        %v940 = vld [vmem:[#allocation2 + $0x34] sm:$0xf]
        %v941 = vld [vmem:[#allocation2 + $0x38] sm:$0xf]
        %v942 = vld [vmem:[#allocation2 + $0x3c] sm:$0xf]
        %v943 = vld [vmem:[#allocation2 + $0x40] sm:$0xf]
        %v944 = vld [vmem:[#allocation2 + $0x44] sm:$0xf]
        %v945 = vld [vmem:[#allocation2 + $0x48] sm:$0xf]
        %v946 = vld [vmem:[#allocation2 + $0x4c] sm:$0xf]
        %v947 = vld [vmem:[#allocation2 + $0x50] sm:$0xf]
        %v948 = vld [vmem:[#allocation2 + $0x54] sm:$0xf]
        %v949 = vld [vmem:[#allocation2 + $0x58] sm:$0xf]
        %v950 = vld [vmem:[#allocation2 + $0x5c] sm:$0xf]
        %v951 = vld [vmem:[#allocation2 + $0x60] sm:$0xf]
        %v952 = vld [vmem:[#allocation2 + $0x64] sm:$0xf]
        %v953 = vld [vmem:[#allocation2 + $0x68] sm:$0xf]
        %v954 = vld [vmem:[#allocation2 + $0x6c] sm:$0xf]
        %v955 = vld [vmem:[#allocation2 + $0x70] sm:$0xf]
        %v956 = vld [vmem:[#allocation2 + $0x74] sm:$0xf]
        %v957 = vld [vmem:[#allocation2 + $0x78] sm:$0xf]
        %v958 = vld [vmem:[#allocation2 + $0x7c] sm:$0xf]
        %v959 = vld [vmem:[#allocation2 + $0x80] sm:$0xf]
        %v960 = vld [vmem:[#allocation2 + $0x84] sm:$0xf]
        %v961 = vld [vmem:[#allocation2 + $0x88] sm:$0xf]
        %v962 = vld [vmem:[#allocation2 + $0x8c] sm:$0xf]
        %v963 = vld [vmem:[#allocation2 + $0x90] sm:$0xf]
        %v964 = vld [vmem:[#allocation2 + $0x94] sm:$0xf]
        %v965 = vld [vmem:[#allocation2 + $0x98] sm:$0xf]
        %v966 = vld [vmem:[#allocation2 + $0x9c] sm:$0xf]
        %v967 = vld [vmem:[#allocation2 + $0xa0] sm:$0xf]
        %v968 = vld [vmem:[#allocation2 + $0xa4] sm:$0xf]
        %v969 = vld [vmem:[#allocation2 + $0xa8] sm:$0xf]
        %v970 = vld [vmem:[#allocation2 + $0xac] sm:$0xf]
        %v971 = vld [vmem:[#allocation2 + $0xb0] sm:$0xf]
        %v972 = vld [vmem:[#allocation2 + $0xb4] sm:$0xf]
        %v973 = vld [vmem:[#allocation2 + $0xb8] sm:$0xf]
        %v974 = vld [vmem:[#allocation2 + $0xbc] sm:$0xf]
        %v975 = vld [vmem:[#allocation2 + $0xc0] sm:$0xf]
        %v976 = vld [vmem:[#allocation2 + $0xc4] sm:$0xf]
        %v977 = vld [vmem:[#allocation2 + $0xc8] sm:$0xf]
        %v978 = vld [vmem:[#allocation2 + $0xcc] sm:$0xf]
        %v979 = vld [vmem:[#allocation2 + $0xd0] sm:$0xf]
        %v980 = vld [vmem:[#allocation2 + $0xd4] sm:$0xf]
        %v981 = vld [vmem:[#allocation2 + $0xd8] sm:$0xf]
        %v982 = vld [vmem:[#allocation2 + $0xdc] sm:$0xf]
        %v983 = vld [vmem:[#allocation2 + $0xe0] sm:$0xf]
        %v984 = vld [vmem:[#allocation2 + $0xe4] sm:$0xf]
        %v985 = vld [vmem:[#allocation2 + $0xe8] sm:$0xf]
        %v986 = vld [vmem:[#allocation2 + $0xec] sm:$0xf]
        %v987 = vld [vmem:[#allocation2 + $0xf0] sm:$0xf]
        %v988 = vld [vmem:[#allocation2 + $0xf4] sm:$0xf]
        %v989 = vld [vmem:[#allocation2 + $0xf8] sm:$0xf]
        %v990 = vld [vmem:[#allocation2 + $0xfc] sm:$0xf]
        %v991 = vld [vmem:[#allocation2 + $0x100] sm:$0xf]
        %v992 = vld [vmem:[#allocation2 + $0x104] sm:$0xf]
        %v993 = vld [vmem:[#allocation2 + $0x108] sm:$0xf]
        %v994 = vld [vmem:[#allocation2 + $0x10c] sm:$0xf]
        %v995 = vld [vmem:[#allocation2 + $0x110] sm:$0xf]
        %v996 = vld [vmem:[#allocation2 + $0x114] sm:$0xf]
        %v997 = vld [vmem:[#allocation2 + $0x118] sm:$0xf]
        %v998 = vld [vmem:[#allocation2 + $0x11c] sm:$0xf]
        %v999 = vld [vmem:[#allocation2 + $0x120] sm:$0xf]
        %v1000 = vld [vmem:[#allocation2 + $0x124] sm:$0xf]
        %v1001 = vld [vmem:[#allocation2 + $0x128] sm:$0xf]
        %v1002 = vld [vmem:[#allocation2 + $0x12c] sm:$0xf]
        %v1003 = vld [vmem:[#allocation2 + $0x130] sm:$0xf]
        %v1004 = vld [vmem:[#allocation2 + $0x134] sm:$0xf]
        %v1005 = vld [vmem:[#allocation2 + $0x138] sm:$0xf]
        %v1006 = vld [vmem:[#allocation2 + $0x13c] sm:$0xf]
        %v1007 = vld [vmem:[#allocation2 + $0x140] sm:$0xf]
        %v1008 = vld [vmem:[#allocation2 + $0x144] sm:$0xf]
        %v1009 = vld [vmem:[#allocation2 + $0x148] sm:$0xf]
        %v1010 = vld [vmem:[#allocation2 + $0x14c] sm:$0xf]
        %v1011 = vld [vmem:[#allocation2 + $0x150] sm:$0xf]
        %v1012 = vld [vmem:[#allocation2 + $0x154] sm:$0xf]
        %v1013 = vld [vmem:[#allocation2 + $0x158] sm:$0xf]
        %v1014 = vld [vmem:[#allocation2 + $0x15c] sm:$0xf]
        %v1015 = vld [vmem:[#allocation2 + $0x160] sm:$0xf]
        %v1016 = vld [vmem:[#allocation2 + $0x164] sm:$0xf]
        %v1017 = vld [vmem:[#allocation2 + $0x168] sm:$0xf]
        %v1018 = vld [vmem:[#allocation2 + $0x16c] sm:$0xf]
        %v1019 = vld [vmem:[#allocation2 + $0x170] sm:$0xf]
        %v1020 = vld [vmem:[#allocation2 + $0x174] sm:$0xf]
        %v1021 = vld [vmem:[#allocation2 + $0x178] sm:$0xf]
        %v1022 = vld [vmem:[#allocation2 + $0x17c] sm:$0xf]
        %v1023 = vld [vmem:[#allocation2 + $0x180] sm:$0xf]
        %v1024 = vld [vmem:[#allocation2 + $0x184] sm:$0xf]
        %v1025 = vld [vmem:[#allocation2 + $0x188] sm:$0xf]
        %v1026 = vld [vmem:[#allocation2 + $0x18c] sm:$0xf]
        %v1027 = vld [vmem:[#allocation2 + $0x190] sm:$0xf]
        %v1028 = vld [vmem:[#allocation2 + $0x194] sm:$0xf]
        %v1029 = vld [vmem:[#allocation2 + $0x198] sm:$0xf]
        %v1030 = vld [vmem:[#allocation2 + $0x19c] sm:$0xf]
        %v1031 = vld [vmem:[#allocation2 + $0x1a0] sm:$0xf]
        %v1032 = vld [vmem:[#allocation2 + $0x1a4] sm:$0xf]
        %v1033 = vld [vmem:[#allocation2 + $0x1a8] sm:$0xf]
        %v1034 = vld [vmem:[#allocation2 + $0x1ac] sm:$0xf]
        %v1035 = vld [vmem:[#allocation2 + $0x1b0] sm:$0xf]
        %v1036 = vld [vmem:[#allocation2 + $0x1b4] sm:$0xf]
        %v1037 = vld [vmem:[#allocation2 + $0x1b8] sm:$0xf]
        %v1038 = vld [vmem:[#allocation2 + $0x1bc] sm:$0xf]
        %v1039 = vld [vmem:[#allocation2 + $0x1c0] sm:$0xf]
        %v1040 = vld [vmem:[#allocation2 + $0x1c4] sm:$0xf]
        %v1041 = vld [vmem:[#allocation2 + $0x1c8] sm:$0xf]
        %v1042 = vld [vmem:[#allocation2 + $0x1cc] sm:$0xf]
        %v1043 = vld [vmem:[#allocation2 + $0x1d0] sm:$0xf]
        %v1044 = vld [vmem:[#allocation2 + $0x1d4] sm:$0xf]
        %v1045 = vld [vmem:[#allocation2 + $0x1d8] sm:$0xf]
        %v1046 = vld [vmem:[#allocation2 + $0x1dc] sm:$0xf]
        %v1047 = vld [vmem:[#allocation2 + $0x1e0] sm:$0xf]
        %v1048 = vld [vmem:[#allocation2 + $0x1e4] sm:$0xf]
        %v1049 = vld [vmem:[#allocation2 + $0x1e8] sm:$0xf]
        %v1050 = vld [vmem:[#allocation2 + $0x1ec] sm:$0xf]
        %v1051 = vld [vmem:[#allocation2 + $0x1f0] sm:$0xf]
        %v1052 = vld [vmem:[#allocation2 + $0x1f4] sm:$0xf]
        %v1053 = vld [vmem:[#allocation2 + $0x1f8] sm:$0xf]
        %v1054 = vld [vmem:[#allocation2 + $0x1fc] sm:$0xf]
        %v1055 = vrot.slane %v931, 4
        %vm1056 = vcmask 1047556
        %v1057 = vsel %vm1056, %v1055, %v927
        %v1059 = vunpack.c.l.s4 1983009808
        %v1060 = vunpack.c.0.s8 %v1059
        %v1061 = vperm.slane %v1057, %v1060
        %v1062 = vrot.slane %v933, 4
        %v1063 = vsel %vm1056, %v1062, %v929
        %v1065 = vunpack.c.l.s4 1983009808
        %v1066 = vunpack.c.0.s8 %v1065
        %v1067 = vperm.slane %v1063, %v1066
        %v1068 = vrot.slane %v1067, 4
        %v1069 = vsel %vm1056, %v1068, %v1061
        %v1070 = vrot.slane %v1061, 4
        %v1071 = vsel %vm1056, %v1067, %v1070
        %v1073 = vunpack.c.l.s4 1934713408
        %v1074 = vunpack.c.0.s8 %v1073
        %v1075 = vperm.slane %v1069, %v1074
        %v1077 = vunpack.c.l.s4 1934713408
        %v1078 = vunpack.c.0.s8 %v1077
        %v1079 = vperm.slane %v1071, %v1078
        %v1080 = vrot.slane %v1075, 4
        %v1081 = vsel %vm1056, 0, %v1080
        %v1082 = vrot.slane %v1079, 4
        %v1083 = vsel %vm1056, 0, %v1082
        %v1084 = vrot.slane %v932, 4
        %v1085 = vsel %vm1056, %v1084, %v928
        %v1087 = vunpack.c.l.s4 1983009808
        %v1088 = vunpack.c.0.s8 %v1087
        %v1089 = vperm.slane %v1085, %v1088
        %v1090 = vrot.slane %v934, 4
        %v1091 = vsel %vm1056, %v1090, %v930
        %v1093 = vunpack.c.l.s4 1983009808
        %v1094 = vunpack.c.0.s8 %v1093
        %v1095 = vperm.slane %v1091, %v1094
        %v1096 = vrot.slane %v1095, 4
        %v1097 = vsel %vm1056, %v1096, %v1089
        %v1098 = vrot.slane %v1089, 4
        %v1099 = vsel %vm1056, %v1095, %v1098
        %v1101 = vunpack.c.l.s4 1934713408
        %v1102 = vunpack.c.0.s8 %v1101
        %v1103 = vperm.slane %v1097, %v1102
        %v1105 = vunpack.c.l.s4 1934713408
        %v1106 = vunpack.c.0.s8 %v1105
        %v1107 = vperm.slane %v1099, %v1106
        %v1108 = vrot.slane %v1103, 4
        %v1109 = vsel %vm1056, 0, %v1108
        %v1110 = vrot.slane %v1107, 4
        %v1111 = vsel %vm1056, 0, %v1110
        %v1112 = vrot.slane %v939, 4
        %v1113 = vsel %vm1056, %v1112, %v935
        %v1115 = vunpack.c.l.s4 1983009808
        %v1116 = vunpack.c.0.s8 %v1115
        %v1117 = vperm.slane %v1113, %v1116
        %v1118 = vrot.slane %v941, 4
        %v1119 = vsel %vm1056, %v1118, %v937
        %v1121 = vunpack.c.l.s4 1983009808
        %v1122 = vunpack.c.0.s8 %v1121
        %v1123 = vperm.slane %v1119, %v1122
        %v1124 = vrot.slane %v1123, 4
        %v1125 = vsel %vm1056, %v1124, %v1117
        %v1126 = vrot.slane %v1117, 4
        %v1127 = vsel %vm1056, %v1123, %v1126
        %v1129 = vunpack.c.l.s4 1934713408
        %v1130 = vunpack.c.0.s8 %v1129
        %v1131 = vperm.slane %v1125, %v1130
        %v1133 = vunpack.c.l.s4 1934713408
        %v1134 = vunpack.c.0.s8 %v1133
        %v1135 = vperm.slane %v1127, %v1134
        %v1136 = vrot.slane %v1131, 4
        %v1137 = vsel %vm1056, 0, %v1136
        %v1138 = vrot.slane %v1135, 4
        %v1139 = vsel %vm1056, 0, %v1138
        %v1140 = vrot.slane %v940, 4
        %v1141 = vsel %vm1056, %v1140, %v936
        %v1143 = vunpack.c.l.s4 1983009808
        %v1144 = vunpack.c.0.s8 %v1143
        %v1145 = vperm.slane %v1141, %v1144
        %v1146 = vrot.slane %v942, 4
        %v1147 = vsel %vm1056, %v1146, %v938
        %v1149 = vunpack.c.l.s4 1983009808
        %v1150 = vunpack.c.0.s8 %v1149
        %v1151 = vperm.slane %v1147, %v1150
        %v1152 = vrot.slane %v1151, 4
        %v1153 = vsel %vm1056, %v1152, %v1145
        %v1154 = vrot.slane %v1145, 4
        %v1155 = vsel %vm1056, %v1151, %v1154
        %v1157 = vunpack.c.l.s4 1934713408
        %v1158 = vunpack.c.0.s8 %v1157
        %v1159 = vperm.slane %v1153, %v1158
        %v1161 = vunpack.c.l.s4 1934713408
        %v1162 = vunpack.c.0.s8 %v1161
        %v1163 = vperm.slane %v1155, %v1162
        %v1164 = vrot.slane %v1159, 4
        %v1165 = vsel %vm1056, 0, %v1164
        %v1166 = vrot.slane %v1163, 4
        %v1167 = vsel %vm1056, 0, %v1166
        %v1168 = vrot.slane %v947, 4
        %v1169 = vsel %vm1056, %v1168, %v943
        %v1171 = vunpack.c.l.s4 1983009808
        %v1172 = vunpack.c.0.s8 %v1171
        %v1173 = vperm.slane %v1169, %v1172
        %v1174 = vrot.slane %v949, 4
        %v1175 = vsel %vm1056, %v1174, %v945
        %v1177 = vunpack.c.l.s4 1983009808
        %v1178 = vunpack.c.0.s8 %v1177
        %v1179 = vperm.slane %v1175, %v1178
        %v1180 = vrot.slane %v1179, 4
        %v1181 = vsel %vm1056, %v1180, %v1173
        %v1182 = vrot.slane %v1173, 4
        %v1183 = vsel %vm1056, %v1179, %v1182
        %v1185 = vunpack.c.l.s4 1934713408
        %v1186 = vunpack.c.0.s8 %v1185
        %v1187 = vperm.slane %v1181, %v1186
        %v1189 = vunpack.c.l.s4 1934713408
        %v1190 = vunpack.c.0.s8 %v1189
        %v1191 = vperm.slane %v1183, %v1190
        %v1192 = vrot.slane %v1187, 4
        %v1193 = vsel %vm1056, 0, %v1192
        %v1194 = vrot.slane %v1191, 4
        %v1195 = vsel %vm1056, 0, %v1194
        %v1196 = vrot.slane %v948, 4
        %v1197 = vsel %vm1056, %v1196, %v944
        %v1199 = vunpack.c.l.s4 1983009808
        %v1200 = vunpack.c.0.s8 %v1199
        %v1201 = vperm.slane %v1197, %v1200
        %v1202 = vrot.slane %v950, 4
        %v1203 = vsel %vm1056, %v1202, %v946
        %v1205 = vunpack.c.l.s4 1983009808
        %v1206 = vunpack.c.0.s8 %v1205
        %v1207 = vperm.slane %v1203, %v1206
        %v1208 = vrot.slane %v1207, 4
        %v1209 = vsel %vm1056, %v1208, %v1201
        %v1210 = vrot.slane %v1201, 4
        %v1211 = vsel %vm1056, %v1207, %v1210
        %v1213 = vunpack.c.l.s4 1934713408
        %v1214 = vunpack.c.0.s8 %v1213
        %v1215 = vperm.slane %v1209, %v1214
        %v1217 = vunpack.c.l.s4 1934713408
        %v1218 = vunpack.c.0.s8 %v1217
        %v1219 = vperm.slane %v1211, %v1218
        %v1220 = vrot.slane %v1215, 4
        %v1221 = vsel %vm1056, 0, %v1220
        %v1222 = vrot.slane %v1219, 4
        %v1223 = vsel %vm1056, 0, %v1222
        %v1224 = vrot.slane %v955, 4
        %v1225 = vsel %vm1056, %v1224, %v951
        %v1227 = vunpack.c.l.s4 1983009808
        %v1228 = vunpack.c.0.s8 %v1227
        %v1229 = vperm.slane %v1225, %v1228
        %v1230 = vrot.slane %v957, 4
        %v1231 = vsel %vm1056, %v1230, %v953
        %v1233 = vunpack.c.l.s4 1983009808
        %v1234 = vunpack.c.0.s8 %v1233
        %v1235 = vperm.slane %v1231, %v1234
        %v1236 = vrot.slane %v1235, 4
        %v1237 = vsel %vm1056, %v1236, %v1229
        %v1238 = vrot.slane %v1229, 4
        %v1239 = vsel %vm1056, %v1235, %v1238
        %v1241 = vunpack.c.l.s4 1934713408
        %v1242 = vunpack.c.0.s8 %v1241
        %v1243 = vperm.slane %v1237, %v1242
        %v1245 = vunpack.c.l.s4 1934713408
        %v1246 = vunpack.c.0.s8 %v1245
        %v1247 = vperm.slane %v1239, %v1246
        %v1248 = vrot.slane %v1243, 4
        %v1249 = vsel %vm1056, 0, %v1248
        %v1250 = vrot.slane %v1247, 4
        %v1251 = vsel %vm1056, 0, %v1250
        %v1252 = vrot.slane %v956, 4
        %v1253 = vsel %vm1056, %v1252, %v952
        %v1255 = vunpack.c.l.s4 1983009808
        %v1256 = vunpack.c.0.s8 %v1255
        %v1257 = vperm.slane %v1253, %v1256
        %v1258 = vrot.slane %v958, 4
        %v1259 = vsel %vm1056, %v1258, %v954
        %v1261 = vunpack.c.l.s4 1983009808
        %v1262 = vunpack.c.0.s8 %v1261
        %v1263 = vperm.slane %v1259, %v1262
        %v1264 = vrot.slane %v1263, 4
        %v1265 = vsel %vm1056, %v1264, %v1257
        %v1266 = vrot.slane %v1257, 4
        %v1267 = vsel %vm1056, %v1263, %v1266
        %v1269 = vunpack.c.l.s4 1934713408
        %v1270 = vunpack.c.0.s8 %v1269
        %v1271 = vperm.slane %v1265, %v1270
        %v1273 = vunpack.c.l.s4 1934713408
        %v1274 = vunpack.c.0.s8 %v1273
        %v1275 = vperm.slane %v1267, %v1274
        %v1276 = vrot.slane %v1271, 4
        %v1277 = vsel %vm1056, 0, %v1276
        %v1278 = vrot.slane %v1275, 4
        %v1279 = vsel %vm1056, 0, %v1278
        %v1280 = vrot.slane %v963, 4
        %v1281 = vsel %vm1056, %v1280, %v959
        %v1283 = vunpack.c.l.s4 1983009808
        %v1284 = vunpack.c.0.s8 %v1283
        %v1285 = vperm.slane %v1281, %v1284
        %v1286 = vrot.slane %v965, 4
        %v1287 = vsel %vm1056, %v1286, %v961
        %v1289 = vunpack.c.l.s4 1983009808
        %v1290 = vunpack.c.0.s8 %v1289
        %v1291 = vperm.slane %v1287, %v1290
        %v1292 = vrot.slane %v1291, 4
        %v1293 = vsel %vm1056, %v1292, %v1285
        %v1294 = vrot.slane %v1285, 4
        %v1295 = vsel %vm1056, %v1291, %v1294
        %v1297 = vunpack.c.l.s4 1934713408
        %v1298 = vunpack.c.0.s8 %v1297
        %v1299 = vperm.slane %v1293, %v1298
        %v1301 = vunpack.c.l.s4 1934713408
        %v1302 = vunpack.c.0.s8 %v1301
        %v1303 = vperm.slane %v1295, %v1302
        %v1304 = vrot.slane %v1299, 4
        %v1305 = vsel %vm1056, 0, %v1304
        %v1306 = vrot.slane %v1303, 4
        %v1307 = vsel %vm1056, 0, %v1306
        %v1308 = vrot.slane %v964, 4
        %v1309 = vsel %vm1056, %v1308, %v960
        %v1311 = vunpack.c.l.s4 1983009808
        %v1312 = vunpack.c.0.s8 %v1311
        %v1313 = vperm.slane %v1309, %v1312
        %v1314 = vrot.slane %v966, 4
        %v1315 = vsel %vm1056, %v1314, %v962
        %v1317 = vunpack.c.l.s4 1983009808
        %v1318 = vunpack.c.0.s8 %v1317
        %v1319 = vperm.slane %v1315, %v1318
        %v1320 = vrot.slane %v1319, 4
        %v1321 = vsel %vm1056, %v1320, %v1313
        %v1322 = vrot.slane %v1313, 4
        %v1323 = vsel %vm1056, %v1319, %v1322
        %v1325 = vunpack.c.l.s4 1934713408
        %v1326 = vunpack.c.0.s8 %v1325
        %v1327 = vperm.slane %v1321, %v1326
        %v1329 = vunpack.c.l.s4 1934713408
        %v1330 = vunpack.c.0.s8 %v1329
        %v1331 = vperm.slane %v1323, %v1330
        %v1332 = vrot.slane %v1327, 4
        %v1333 = vsel %vm1056, 0, %v1332
        %v1334 = vrot.slane %v1331, 4
        %v1335 = vsel %vm1056, 0, %v1334
        %v1336 = vrot.slane %v971, 4
        %v1337 = vsel %vm1056, %v1336, %v967
        %v1339 = vunpack.c.l.s4 1983009808
        %v1340 = vunpack.c.0.s8 %v1339
        %v1341 = vperm.slane %v1337, %v1340
        %v1342 = vrot.slane %v973, 4
        %v1343 = vsel %vm1056, %v1342, %v969
        %v1345 = vunpack.c.l.s4 1983009808
        %v1346 = vunpack.c.0.s8 %v1345
        %v1347 = vperm.slane %v1343, %v1346
        %v1348 = vrot.slane %v1347, 4
        %v1349 = vsel %vm1056, %v1348, %v1341
        %v1350 = vrot.slane %v1341, 4
        %v1351 = vsel %vm1056, %v1347, %v1350
        %v1353 = vunpack.c.l.s4 1934713408
        %v1354 = vunpack.c.0.s8 %v1353
        %v1355 = vperm.slane %v1349, %v1354
        %v1357 = vunpack.c.l.s4 1934713408
        %v1358 = vunpack.c.0.s8 %v1357
        %v1359 = vperm.slane %v1351, %v1358
        %v1360 = vrot.slane %v1355, 4
        %v1361 = vsel %vm1056, 0, %v1360
        %v1362 = vrot.slane %v1359, 4
        %v1363 = vsel %vm1056, 0, %v1362
        %v1364 = vrot.slane %v972, 4
        %v1365 = vsel %vm1056, %v1364, %v968
        %v1367 = vunpack.c.l.s4 1983009808
        %v1368 = vunpack.c.0.s8 %v1367
        %v1369 = vperm.slane %v1365, %v1368
        %v1370 = vrot.slane %v974, 4
        %v1371 = vsel %vm1056, %v1370, %v970
        %v1373 = vunpack.c.l.s4 1983009808
        %v1374 = vunpack.c.0.s8 %v1373
        %v1375 = vperm.slane %v1371, %v1374
        %v1376 = vrot.slane %v1375, 4
        %v1377 = vsel %vm1056, %v1376, %v1369
        %v1378 = vrot.slane %v1369, 4
        %v1379 = vsel %vm1056, %v1375, %v1378
        %v1381 = vunpack.c.l.s4 1934713408
        %v1382 = vunpack.c.0.s8 %v1381
        %v1383 = vperm.slane %v1377, %v1382
        %v1385 = vunpack.c.l.s4 1934713408
        %v1386 = vunpack.c.0.s8 %v1385
        %v1387 = vperm.slane %v1379, %v1386
        %v1388 = vrot.slane %v1383, 4
        %v1389 = vsel %vm1056, 0, %v1388
        %v1390 = vrot.slane %v1387, 4
        %v1391 = vsel %vm1056, 0, %v1390
        %v1392 = vrot.slane %v979, 4
        %v1393 = vsel %vm1056, %v1392, %v975
        %v1395 = vunpack.c.l.s4 1983009808
        %v1396 = vunpack.c.0.s8 %v1395
        %v1397 = vperm.slane %v1393, %v1396
        %v1398 = vrot.slane %v981, 4
        %v1399 = vsel %vm1056, %v1398, %v977
        %v1401 = vunpack.c.l.s4 1983009808
        %v1402 = vunpack.c.0.s8 %v1401
        %v1403 = vperm.slane %v1399, %v1402
        %v1404 = vrot.slane %v1403, 4
        %v1405 = vsel %vm1056, %v1404, %v1397
        %v1406 = vrot.slane %v1397, 4
        %v1407 = vsel %vm1056, %v1403, %v1406
        %v1409 = vunpack.c.l.s4 1934713408
        %v1410 = vunpack.c.0.s8 %v1409
        %v1411 = vperm.slane %v1405, %v1410
        %v1413 = vunpack.c.l.s4 1934713408
        %v1414 = vunpack.c.0.s8 %v1413
        %v1415 = vperm.slane %v1407, %v1414
        %v1416 = vrot.slane %v1411, 4
        %v1417 = vsel %vm1056, 0, %v1416
        %v1418 = vrot.slane %v1415, 4
        %v1419 = vsel %vm1056, 0, %v1418
        %v1420 = vrot.slane %v980, 4
        %v1421 = vsel %vm1056, %v1420, %v976
        %v1423 = vunpack.c.l.s4 1983009808
        %v1424 = vunpack.c.0.s8 %v1423
        %v1425 = vperm.slane %v1421, %v1424
        %v1426 = vrot.slane %v982, 4
        %v1427 = vsel %vm1056, %v1426, %v978
        %v1429 = vunpack.c.l.s4 1983009808
        %v1430 = vunpack.c.0.s8 %v1429
        %v1431 = vperm.slane %v1427, %v1430
        %v1432 = vrot.slane %v1431, 4
        %v1433 = vsel %vm1056, %v1432, %v1425
        %v1434 = vrot.slane %v1425, 4
        %v1435 = vsel %vm1056, %v1431, %v1434
        %v1437 = vunpack.c.l.s4 1934713408
        %v1438 = vunpack.c.0.s8 %v1437
        %v1439 = vperm.slane %v1433, %v1438
        %v1441 = vunpack.c.l.s4 1934713408
        %v1442 = vunpack.c.0.s8 %v1441
        %v1443 = vperm.slane %v1435, %v1442
        %v1444 = vrot.slane %v1439, 4
        %v1445 = vsel %vm1056, 0, %v1444
        %v1446 = vrot.slane %v1443, 4
        %v1447 = vsel %vm1056, 0, %v1446
        %v1448 = vrot.slane %v987, 4
        %v1449 = vsel %vm1056, %v1448, %v983
        %v1451 = vunpack.c.l.s4 1983009808
        %v1452 = vunpack.c.0.s8 %v1451
        %v1453 = vperm.slane %v1449, %v1452
        %v1454 = vrot.slane %v989, 4
        %v1455 = vsel %vm1056, %v1454, %v985
        %v1457 = vunpack.c.l.s4 1983009808
        %v1458 = vunpack.c.0.s8 %v1457
        %v1459 = vperm.slane %v1455, %v1458
        %v1460 = vrot.slane %v1459, 4
        %v1461 = vsel %vm1056, %v1460, %v1453
        %v1462 = vrot.slane %v1453, 4
        %v1463 = vsel %vm1056, %v1459, %v1462
        %v1465 = vunpack.c.l.s4 1934713408
        %v1466 = vunpack.c.0.s8 %v1465
        %v1467 = vperm.slane %v1461, %v1466
        %v1469 = vunpack.c.l.s4 1934713408
        %v1470 = vunpack.c.0.s8 %v1469
        %v1471 = vperm.slane %v1463, %v1470
        %v1472 = vrot.slane %v1467, 4
        %v1473 = vsel %vm1056, 0, %v1472
        %v1474 = vrot.slane %v1471, 4
        %v1475 = vsel %vm1056, 0, %v1474
        %v1476 = vrot.slane %v988, 4
        %v1477 = vsel %vm1056, %v1476, %v984
        %v1479 = vunpack.c.l.s4 1983009808
        %v1480 = vunpack.c.0.s8 %v1479
        %v1481 = vperm.slane %v1477, %v1480
        %v1482 = vrot.slane %v990, 4
        %v1483 = vsel %vm1056, %v1482, %v986
        %v1485 = vunpack.c.l.s4 1983009808
        %v1486 = vunpack.c.0.s8 %v1485
        %v1487 = vperm.slane %v1483, %v1486
        %v1488 = vrot.slane %v1487, 4
        %v1489 = vsel %vm1056, %v1488, %v1481
        %v1490 = vrot.slane %v1481, 4
        %v1491 = vsel %vm1056, %v1487, %v1490
        %v1493 = vunpack.c.l.s4 1934713408
        %v1494 = vunpack.c.0.s8 %v1493
        %v1495 = vperm.slane %v1489, %v1494
        %v1497 = vunpack.c.l.s4 1934713408
        %v1498 = vunpack.c.0.s8 %v1497
        %v1499 = vperm.slane %v1491, %v1498
        %v1500 = vrot.slane %v1495, 4
        %v1501 = vsel %vm1056, 0, %v1500
        %v1502 = vrot.slane %v1499, 4
        %v1503 = vsel %vm1056, 0, %v1502
        %v1504 = vrot.slane %v995, 4
        %v1505 = vsel %vm1056, %v1504, %v991
        %v1507 = vunpack.c.l.s4 1983009808
        %v1508 = vunpack.c.0.s8 %v1507
        %v1509 = vperm.slane %v1505, %v1508
        %v1510 = vrot.slane %v997, 4
        %v1511 = vsel %vm1056, %v1510, %v993
        %v1513 = vunpack.c.l.s4 1983009808
        %v1514 = vunpack.c.0.s8 %v1513
        %v1515 = vperm.slane %v1511, %v1514
        %v1516 = vrot.slane %v1515, 4
        %v1517 = vsel %vm1056, %v1516, %v1509
        %v1518 = vrot.slane %v1509, 4
        %v1519 = vsel %vm1056, %v1515, %v1518
        %v1521 = vunpack.c.l.s4 1934713408
        %v1522 = vunpack.c.0.s8 %v1521
        %v1523 = vperm.slane %v1517, %v1522
        %v1525 = vunpack.c.l.s4 1934713408
        %v1526 = vunpack.c.0.s8 %v1525
        %v1527 = vperm.slane %v1519, %v1526
        %v1528 = vrot.slane %v1523, 4
        %v1529 = vsel %vm1056, 0, %v1528
        %v1530 = vrot.slane %v1527, 4
        %v1531 = vsel %vm1056, 0, %v1530
        %v1532 = vrot.slane %v996, 4
        %v1533 = vsel %vm1056, %v1532, %v992
        %v1535 = vunpack.c.l.s4 1983009808
        %v1536 = vunpack.c.0.s8 %v1535
        %v1537 = vperm.slane %v1533, %v1536
        %v1538 = vrot.slane %v998, 4
        %v1539 = vsel %vm1056, %v1538, %v994
        %v1541 = vunpack.c.l.s4 1983009808
        %v1542 = vunpack.c.0.s8 %v1541
        %v1543 = vperm.slane %v1539, %v1542
        %v1544 = vrot.slane %v1543, 4
        %v1545 = vsel %vm1056, %v1544, %v1537
        %v1546 = vrot.slane %v1537, 4
        %v1547 = vsel %vm1056, %v1543, %v1546
        %v1549 = vunpack.c.l.s4 1934713408
        %v1550 = vunpack.c.0.s8 %v1549
        %v1551 = vperm.slane %v1545, %v1550
        %v1553 = vunpack.c.l.s4 1934713408
        %v1554 = vunpack.c.0.s8 %v1553
        %v1555 = vperm.slane %v1547, %v1554
        %v1556 = vrot.slane %v1551, 4
        %v1557 = vsel %vm1056, 0, %v1556
        %v1558 = vrot.slane %v1555, 4
        %v1559 = vsel %vm1056, 0, %v1558
        %v1560 = vrot.slane %v1003, 4
        %v1561 = vsel %vm1056, %v1560, %v999
        %v1563 = vunpack.c.l.s4 1983009808
        %v1564 = vunpack.c.0.s8 %v1563
        %v1565 = vperm.slane %v1561, %v1564
        %v1566 = vrot.slane %v1005, 4
        %v1567 = vsel %vm1056, %v1566, %v1001
        %v1569 = vunpack.c.l.s4 1983009808
        %v1570 = vunpack.c.0.s8 %v1569
        %v1571 = vperm.slane %v1567, %v1570
        %v1572 = vrot.slane %v1571, 4
        %v1573 = vsel %vm1056, %v1572, %v1565
        %v1574 = vrot.slane %v1565, 4
        %v1575 = vsel %vm1056, %v1571, %v1574
        %v1577 = vunpack.c.l.s4 1934713408
        %v1578 = vunpack.c.0.s8 %v1577
        %v1579 = vperm.slane %v1573, %v1578
        %v1581 = vunpack.c.l.s4 1934713408
        %v1582 = vunpack.c.0.s8 %v1581
        %v1583 = vperm.slane %v1575, %v1582
        %v1584 = vrot.slane %v1579, 4
        %v1585 = vsel %vm1056, 0, %v1584
        %v1586 = vrot.slane %v1583, 4
        %v1587 = vsel %vm1056, 0, %v1586
        %v1588 = vrot.slane %v1004, 4
        %v1589 = vsel %vm1056, %v1588, %v1000
        %v1591 = vunpack.c.l.s4 1983009808
        %v1592 = vunpack.c.0.s8 %v1591
        %v1593 = vperm.slane %v1589, %v1592
        %v1594 = vrot.slane %v1006, 4
        %v1595 = vsel %vm1056, %v1594, %v1002
        %v1597 = vunpack.c.l.s4 1983009808
        %v1598 = vunpack.c.0.s8 %v1597
        %v1599 = vperm.slane %v1595, %v1598
        %v1600 = vrot.slane %v1599, 4
        %v1601 = vsel %vm1056, %v1600, %v1593
        %v1602 = vrot.slane %v1593, 4
        %v1603 = vsel %vm1056, %v1599, %v1602
        %v1605 = vunpack.c.l.s4 1934713408
        %v1606 = vunpack.c.0.s8 %v1605
        %v1607 = vperm.slane %v1601, %v1606
        %v1609 = vunpack.c.l.s4 1934713408
        %v1610 = vunpack.c.0.s8 %v1609
        %v1611 = vperm.slane %v1603, %v1610
        %v1612 = vrot.slane %v1607, 4
        %v1613 = vsel %vm1056, 0, %v1612
        %v1614 = vrot.slane %v1611, 4
        %v1615 = vsel %vm1056, 0, %v1614
        %v1616 = vrot.slane %v1011, 4
        %v1617 = vsel %vm1056, %v1616, %v1007
        %v1619 = vunpack.c.l.s4 1983009808
        %v1620 = vunpack.c.0.s8 %v1619
        %v1621 = vperm.slane %v1617, %v1620
        %v1622 = vrot.slane %v1013, 4
        %v1623 = vsel %vm1056, %v1622, %v1009
        %v1625 = vunpack.c.l.s4 1983009808
        %v1626 = vunpack.c.0.s8 %v1625
        %v1627 = vperm.slane %v1623, %v1626
        %v1628 = vrot.slane %v1627, 4
        %v1629 = vsel %vm1056, %v1628, %v1621
        %v1630 = vrot.slane %v1621, 4
        %v1631 = vsel %vm1056, %v1627, %v1630
        %v1633 = vunpack.c.l.s4 1934713408
        %v1634 = vunpack.c.0.s8 %v1633
        %v1635 = vperm.slane %v1629, %v1634
        %v1637 = vunpack.c.l.s4 1934713408
        %v1638 = vunpack.c.0.s8 %v1637
        %v1639 = vperm.slane %v1631, %v1638
        %v1640 = vrot.slane %v1635, 4
        %v1641 = vsel %vm1056, 0, %v1640
        %v1642 = vrot.slane %v1639, 4
        %v1643 = vsel %vm1056, 0, %v1642
        %v1644 = vrot.slane %v1012, 4
        %v1645 = vsel %vm1056, %v1644, %v1008
        %v1647 = vunpack.c.l.s4 1983009808
        %v1648 = vunpack.c.0.s8 %v1647
        %v1649 = vperm.slane %v1645, %v1648
        %v1650 = vrot.slane %v1014, 4
        %v1651 = vsel %vm1056, %v1650, %v1010
        %v1653 = vunpack.c.l.s4 1983009808
        %v1654 = vunpack.c.0.s8 %v1653
        %v1655 = vperm.slane %v1651, %v1654
        %v1656 = vrot.slane %v1655, 4
        %v1657 = vsel %vm1056, %v1656, %v1649
        %v1658 = vrot.slane %v1649, 4
        %v1659 = vsel %vm1056, %v1655, %v1658
        %v1661 = vunpack.c.l.s4 1934713408
        %v1662 = vunpack.c.0.s8 %v1661
        %v1663 = vperm.slane %v1657, %v1662
        %v1665 = vunpack.c.l.s4 1934713408
        %v1666 = vunpack.c.0.s8 %v1665
        %v1667 = vperm.slane %v1659, %v1666
        %v1668 = vrot.slane %v1663, 4
        %v1669 = vsel %vm1056, 0, %v1668
        %v1670 = vrot.slane %v1667, 4
        %v1671 = vsel %vm1056, 0, %v1670
        %v1672 = vrot.slane %v1019, 4
        %v1673 = vsel %vm1056, %v1672, %v1015
        %v1675 = vunpack.c.l.s4 1983009808
        %v1676 = vunpack.c.0.s8 %v1675
        %v1677 = vperm.slane %v1673, %v1676
        %v1678 = vrot.slane %v1021, 4
        %v1679 = vsel %vm1056, %v1678, %v1017
        %v1681 = vunpack.c.l.s4 1983009808
        %v1682 = vunpack.c.0.s8 %v1681
        %v1683 = vperm.slane %v1679, %v1682
        %v1684 = vrot.slane %v1683, 4
        %v1685 = vsel %vm1056, %v1684, %v1677
        %v1686 = vrot.slane %v1677, 4
        %v1687 = vsel %vm1056, %v1683, %v1686
        %v1689 = vunpack.c.l.s4 1934713408
        %v1690 = vunpack.c.0.s8 %v1689
        %v1691 = vperm.slane %v1685, %v1690
        %v1693 = vunpack.c.l.s4 1934713408
        %v1694 = vunpack.c.0.s8 %v1693
        %v1695 = vperm.slane %v1687, %v1694
        %v1696 = vrot.slane %v1691, 4
        %v1697 = vsel %vm1056, 0, %v1696
        %v1698 = vrot.slane %v1695, 4
        %v1699 = vsel %vm1056, 0, %v1698
        %v1700 = vrot.slane %v1020, 4
        %v1701 = vsel %vm1056, %v1700, %v1016
        %v1703 = vunpack.c.l.s4 1983009808
        %v1704 = vunpack.c.0.s8 %v1703
        %v1705 = vperm.slane %v1701, %v1704
        %v1706 = vrot.slane %v1022, 4
        %v1707 = vsel %vm1056, %v1706, %v1018
        %v1709 = vunpack.c.l.s4 1983009808
        %v1710 = vunpack.c.0.s8 %v1709
        %v1711 = vperm.slane %v1707, %v1710
        %v1712 = vrot.slane %v1711, 4
        %v1713 = vsel %vm1056, %v1712, %v1705
        %v1714 = vrot.slane %v1705, 4
        %v1715 = vsel %vm1056, %v1711, %v1714
        %v1717 = vunpack.c.l.s4 1934713408
        %v1718 = vunpack.c.0.s8 %v1717
        %v1719 = vperm.slane %v1713, %v1718
        %v1721 = vunpack.c.l.s4 1934713408
        %v1722 = vunpack.c.0.s8 %v1721
        %v1723 = vperm.slane %v1715, %v1722
        %v1724 = vrot.slane %v1719, 4
        %v1725 = vsel %vm1056, 0, %v1724
        %v1726 = vrot.slane %v1723, 4
        %v1727 = vsel %vm1056, 0, %v1726
        %v1728 = vrot.slane %v1027, 4
        %v1729 = vsel %vm1056, %v1728, %v1023
        %v1731 = vunpack.c.l.s4 1983009808
        %v1732 = vunpack.c.0.s8 %v1731
        %v1733 = vperm.slane %v1729, %v1732
        %v1734 = vrot.slane %v1029, 4
        %v1735 = vsel %vm1056, %v1734, %v1025
        %v1737 = vunpack.c.l.s4 1983009808
        %v1738 = vunpack.c.0.s8 %v1737
        %v1739 = vperm.slane %v1735, %v1738
        %v1740 = vrot.slane %v1739, 4
        %v1741 = vsel %vm1056, %v1740, %v1733
        %v1742 = vrot.slane %v1733, 4
        %v1743 = vsel %vm1056, %v1739, %v1742
        %v1745 = vunpack.c.l.s4 1934713408
        %v1746 = vunpack.c.0.s8 %v1745
        %v1747 = vperm.slane %v1741, %v1746
        %v1749 = vunpack.c.l.s4 1934713408
        %v1750 = vunpack.c.0.s8 %v1749
        %v1751 = vperm.slane %v1743, %v1750
        %v1752 = vrot.slane %v1747, 4
        %v1753 = vsel %vm1056, 0, %v1752
        %v1754 = vrot.slane %v1751, 4
        %v1755 = vsel %vm1056, 0, %v1754
        %v1756 = vrot.slane %v1028, 4
        %v1757 = vsel %vm1056, %v1756, %v1024
        %v1759 = vunpack.c.l.s4 1983009808
        %v1760 = vunpack.c.0.s8 %v1759
        %v1761 = vperm.slane %v1757, %v1760
        %v1762 = vrot.slane %v1030, 4
        %v1763 = vsel %vm1056, %v1762, %v1026
        %v1765 = vunpack.c.l.s4 1983009808
        %v1766 = vunpack.c.0.s8 %v1765
        %v1767 = vperm.slane %v1763, %v1766
        %v1768 = vrot.slane %v1767, 4
        %v1769 = vsel %vm1056, %v1768, %v1761
        %v1770 = vrot.slane %v1761, 4
        %v1771 = vsel %vm1056, %v1767, %v1770
        %v1773 = vunpack.c.l.s4 1934713408
        %v1774 = vunpack.c.0.s8 %v1773
        %v1775 = vperm.slane %v1769, %v1774
        %v1777 = vunpack.c.l.s4 1934713408
        %v1778 = vunpack.c.0.s8 %v1777
        %v1779 = vperm.slane %v1771, %v1778
        %v1780 = vrot.slane %v1775, 4
        %v1781 = vsel %vm1056, 0, %v1780
        %v1782 = vrot.slane %v1779, 4
        %v1783 = vsel %vm1056, 0, %v1782
        %v1784 = vrot.slane %v1035, 4
        %v1785 = vsel %vm1056, %v1784, %v1031
        %v1787 = vunpack.c.l.s4 1983009808
        %v1788 = vunpack.c.0.s8 %v1787
        %v1789 = vperm.slane %v1785, %v1788
        %v1790 = vrot.slane %v1037, 4
        %v1791 = vsel %vm1056, %v1790, %v1033
        %v1793 = vunpack.c.l.s4 1983009808
        %v1794 = vunpack.c.0.s8 %v1793
        %v1795 = vperm.slane %v1791, %v1794
        %v1796 = vrot.slane %v1795, 4
        %v1797 = vsel %vm1056, %v1796, %v1789
        %v1798 = vrot.slane %v1789, 4
        %v1799 = vsel %vm1056, %v1795, %v1798
        %v1801 = vunpack.c.l.s4 1934713408
        %v1802 = vunpack.c.0.s8 %v1801
        %v1803 = vperm.slane %v1797, %v1802
        %v1805 = vunpack.c.l.s4 1934713408
        %v1806 = vunpack.c.0.s8 %v1805
        %v1807 = vperm.slane %v1799, %v1806
        %v1808 = vrot.slane %v1803, 4
        %v1809 = vsel %vm1056, 0, %v1808
        %v1810 = vrot.slane %v1807, 4
        %v1811 = vsel %vm1056, 0, %v1810
        %v1812 = vrot.slane %v1036, 4
        %v1813 = vsel %vm1056, %v1812, %v1032
        %v1815 = vunpack.c.l.s4 1983009808
        %v1816 = vunpack.c.0.s8 %v1815
        %v1817 = vperm.slane %v1813, %v1816
        %v1818 = vrot.slane %v1038, 4
        %v1819 = vsel %vm1056, %v1818, %v1034
        %v1821 = vunpack.c.l.s4 1983009808
        %v1822 = vunpack.c.0.s8 %v1821
        %v1823 = vperm.slane %v1819, %v1822
        %v1824 = vrot.slane %v1823, 4
        %v1825 = vsel %vm1056, %v1824, %v1817
        %v1826 = vrot.slane %v1817, 4
        %v1827 = vsel %vm1056, %v1823, %v1826
        %v1829 = vunpack.c.l.s4 1934713408
        %v1830 = vunpack.c.0.s8 %v1829
        %v1831 = vperm.slane %v1825, %v1830
        %v1833 = vunpack.c.l.s4 1934713408
        %v1834 = vunpack.c.0.s8 %v1833
        %v1835 = vperm.slane %v1827, %v1834
        %v1836 = vrot.slane %v1831, 4
        %v1837 = vsel %vm1056, 0, %v1836
        %v1838 = vrot.slane %v1835, 4
        %v1839 = vsel %vm1056, 0, %v1838
        %v1840 = vrot.slane %v1043, 4
        %v1841 = vsel %vm1056, %v1840, %v1039
        %v1843 = vunpack.c.l.s4 1983009808
        %v1844 = vunpack.c.0.s8 %v1843
        %v1845 = vperm.slane %v1841, %v1844
        %v1846 = vrot.slane %v1045, 4
        %v1847 = vsel %vm1056, %v1846, %v1041
        %v1849 = vunpack.c.l.s4 1983009808
        %v1850 = vunpack.c.0.s8 %v1849
        %v1851 = vperm.slane %v1847, %v1850
        %v1852 = vrot.slane %v1851, 4
        %v1853 = vsel %vm1056, %v1852, %v1845
        %v1854 = vrot.slane %v1845, 4
        %v1855 = vsel %vm1056, %v1851, %v1854
        %v1857 = vunpack.c.l.s4 1934713408
        %v1858 = vunpack.c.0.s8 %v1857
        %v1859 = vperm.slane %v1853, %v1858
        %v1861 = vunpack.c.l.s4 1934713408
        %v1862 = vunpack.c.0.s8 %v1861
        %v1863 = vperm.slane %v1855, %v1862
        %v1864 = vrot.slane %v1859, 4
        %v1865 = vsel %vm1056, 0, %v1864
        %v1866 = vrot.slane %v1863, 4
        %v1867 = vsel %vm1056, 0, %v1866
        %v1868 = vrot.slane %v1044, 4
        %v1869 = vsel %vm1056, %v1868, %v1040
        %v1871 = vunpack.c.l.s4 1983009808
        %v1872 = vunpack.c.0.s8 %v1871
        %v1873 = vperm.slane %v1869, %v1872
        %v1874 = vrot.slane %v1046, 4
        %v1875 = vsel %vm1056, %v1874, %v1042
        %v1877 = vunpack.c.l.s4 1983009808
        %v1878 = vunpack.c.0.s8 %v1877
        %v1879 = vperm.slane %v1875, %v1878
        %v1880 = vrot.slane %v1879, 4
        %v1881 = vsel %vm1056, %v1880, %v1873
        %v1882 = vrot.slane %v1873, 4
        %v1883 = vsel %vm1056, %v1879, %v1882
        %v1885 = vunpack.c.l.s4 1934713408
        %v1886 = vunpack.c.0.s8 %v1885
        %v1887 = vperm.slane %v1881, %v1886
        %v1889 = vunpack.c.l.s4 1934713408
        %v1890 = vunpack.c.0.s8 %v1889
        %v1891 = vperm.slane %v1883, %v1890
        %v1892 = vrot.slane %v1887, 4
        %v1893 = vsel %vm1056, 0, %v1892
        %v1894 = vrot.slane %v1891, 4
        %v1895 = vsel %vm1056, 0, %v1894
        %v1896 = vrot.slane %v1051, 4
        %v1897 = vsel %vm1056, %v1896, %v1047
        %v1899 = vunpack.c.l.s4 1983009808
        %v1900 = vunpack.c.0.s8 %v1899
        %v1901 = vperm.slane %v1897, %v1900
        %v1902 = vrot.slane %v1053, 4
        %v1903 = vsel %vm1056, %v1902, %v1049
        %v1905 = vunpack.c.l.s4 1983009808
        %v1906 = vunpack.c.0.s8 %v1905
        %v1907 = vperm.slane %v1903, %v1906
        %v1908 = vrot.slane %v1907, 4
        %v1909 = vsel %vm1056, %v1908, %v1901
        %v1910 = vrot.slane %v1901, 4
        %v1911 = vsel %vm1056, %v1907, %v1910
        %v1913 = vunpack.c.l.s4 1934713408
        %v1914 = vunpack.c.0.s8 %v1913
        %v1915 = vperm.slane %v1909, %v1914
        %v1917 = vunpack.c.l.s4 1934713408
        %v1918 = vunpack.c.0.s8 %v1917
        %v1919 = vperm.slane %v1911, %v1918
        %v1920 = vrot.slane %v1915, 4
        %v1921 = vsel %vm1056, 0, %v1920
        %v1922 = vrot.slane %v1919, 4
        %v1923 = vsel %vm1056, 0, %v1922
        %v1924 = vrot.slane %v1052, 4
        %v1925 = vsel %vm1056, %v1924, %v1048
        %v1927 = vunpack.c.l.s4 1983009808
        %v1928 = vunpack.c.0.s8 %v1927
        %v1929 = vperm.slane %v1925, %v1928
        %v1930 = vrot.slane %v1054, 4
        %v1931 = vsel %vm1056, %v1930, %v1050
        %v1933 = vunpack.c.l.s4 1983009808
        %v1934 = vunpack.c.0.s8 %v1933
        %v1935 = vperm.slane %v1931, %v1934
        %v1936 = vrot.slane %v1935, 4
        %v1937 = vsel %vm1056, %v1936, %v1929
        %v1938 = vrot.slane %v1929, 4
        %v1939 = vsel %vm1056, %v1935, %v1938
        %v1941 = vunpack.c.l.s4 1934713408
        %v1942 = vunpack.c.0.s8 %v1941
        %v1943 = vperm.slane %v1937, %v1942
        %v1945 = vunpack.c.l.s4 1934713408
        %v1946 = vunpack.c.0.s8 %v1945
        %v1947 = vperm.slane %v1939, %v1946
        %v1948 = vrot.slane %v1943, 4
        %v1949 = vsel %vm1056, 0, %v1948
        %v1950 = vrot.slane %v1947, 4
        %v1951 = vsel %vm1056, 0, %v1950
        %v1954 = vpack.i.b16 %v1103, %v1075
        %v1955 = vshrl.u32 %v1075, 16
        %v1956 = vshrl.u32 %v1103, 16
        %v1957 = vpack.i.b16 %v1956, %v1955
        %v1960 = vpack.i.b16 %v1109, %v1081
        %v1961 = vshrl.u32 %v1081, 16
        %v1962 = vshrl.u32 %v1109, 16
        %v1963 = vpack.i.b16 %v1962, %v1961
        %v1966 = vpack.i.b16 %v1107, %v1079
        %v1967 = vshrl.u32 %v1079, 16
        %v1968 = vshrl.u32 %v1107, 16
        %v1969 = vpack.i.b16 %v1968, %v1967
        %v1972 = vpack.i.b16 %v1111, %v1083
        %v1973 = vshrl.u32 %v1083, 16
        %v1974 = vshrl.u32 %v1111, 16
        %v1975 = vpack.i.b16 %v1974, %v1973
        %v1978 = vpack.i.b16 %v1159, %v1131
        %v1979 = vshrl.u32 %v1131, 16
        %v1980 = vshrl.u32 %v1159, 16
        %v1981 = vpack.i.b16 %v1980, %v1979
        %v1984 = vpack.i.b16 %v1165, %v1137
        %v1985 = vshrl.u32 %v1137, 16
        %v1986 = vshrl.u32 %v1165, 16
        %v1987 = vpack.i.b16 %v1986, %v1985
        %v1990 = vpack.i.b16 %v1163, %v1135
        %v1991 = vshrl.u32 %v1135, 16
        %v1992 = vshrl.u32 %v1163, 16
        %v1993 = vpack.i.b16 %v1992, %v1991
        %v1996 = vpack.i.b16 %v1167, %v1139
        %v1997 = vshrl.u32 %v1139, 16
        %v1998 = vshrl.u32 %v1167, 16
        %v1999 = vpack.i.b16 %v1998, %v1997
        %v2002 = vpack.i.b16 %v1215, %v1187
        %v2003 = vshrl.u32 %v1187, 16
        %v2004 = vshrl.u32 %v1215, 16
        %v2005 = vpack.i.b16 %v2004, %v2003
        %v2008 = vpack.i.b16 %v1221, %v1193
        %v2009 = vshrl.u32 %v1193, 16
        %v2010 = vshrl.u32 %v1221, 16
        %v2011 = vpack.i.b16 %v2010, %v2009
        %v2014 = vpack.i.b16 %v1219, %v1191
        %v2015 = vshrl.u32 %v1191, 16
        %v2016 = vshrl.u32 %v1219, 16
        %v2017 = vpack.i.b16 %v2016, %v2015
        %v2020 = vpack.i.b16 %v1223, %v1195
        %v2021 = vshrl.u32 %v1195, 16
        %v2022 = vshrl.u32 %v1223, 16
        %v2023 = vpack.i.b16 %v2022, %v2021
        %v2026 = vpack.i.b16 %v1271, %v1243
        %v2027 = vshrl.u32 %v1243, 16
        %v2028 = vshrl.u32 %v1271, 16
        %v2029 = vpack.i.b16 %v2028, %v2027
        %v2032 = vpack.i.b16 %v1277, %v1249
        %v2033 = vshrl.u32 %v1249, 16
        %v2034 = vshrl.u32 %v1277, 16
        %v2035 = vpack.i.b16 %v2034, %v2033
        %v2038 = vpack.i.b16 %v1275, %v1247
        %v2039 = vshrl.u32 %v1247, 16
        %v2040 = vshrl.u32 %v1275, 16
        %v2041 = vpack.i.b16 %v2040, %v2039
        %v2044 = vpack.i.b16 %v1279, %v1251
        %v2045 = vshrl.u32 %v1251, 16
        %v2046 = vshrl.u32 %v1279, 16
        %v2047 = vpack.i.b16 %v2046, %v2045
        %v2050 = vpack.i.b16 %v1327, %v1299
        %v2051 = vshrl.u32 %v1299, 16
        %v2052 = vshrl.u32 %v1327, 16
        %v2053 = vpack.i.b16 %v2052, %v2051
        %v2056 = vpack.i.b16 %v1333, %v1305
        %v2057 = vshrl.u32 %v1305, 16
        %v2058 = vshrl.u32 %v1333, 16
        %v2059 = vpack.i.b16 %v2058, %v2057
        %v2062 = vpack.i.b16 %v1331, %v1303
        %v2063 = vshrl.u32 %v1303, 16
        %v2064 = vshrl.u32 %v1331, 16
        %v2065 = vpack.i.b16 %v2064, %v2063
        %v2068 = vpack.i.b16 %v1335, %v1307
        %v2069 = vshrl.u32 %v1307, 16
        %v2070 = vshrl.u32 %v1335, 16
        %v2071 = vpack.i.b16 %v2070, %v2069
        %v2074 = vpack.i.b16 %v1383, %v1355
        %v2075 = vshrl.u32 %v1355, 16
        %v2076 = vshrl.u32 %v1383, 16
        %v2077 = vpack.i.b16 %v2076, %v2075
        %v2080 = vpack.i.b16 %v1389, %v1361
        %v2081 = vshrl.u32 %v1361, 16
        %v2082 = vshrl.u32 %v1389, 16
        %v2083 = vpack.i.b16 %v2082, %v2081
        %v2086 = vpack.i.b16 %v1387, %v1359
        %v2087 = vshrl.u32 %v1359, 16
        %v2088 = vshrl.u32 %v1387, 16
        %v2089 = vpack.i.b16 %v2088, %v2087
        %v2092 = vpack.i.b16 %v1391, %v1363
        %v2093 = vshrl.u32 %v1363, 16
        %v2094 = vshrl.u32 %v1391, 16
        %v2095 = vpack.i.b16 %v2094, %v2093
        %v2098 = vpack.i.b16 %v1439, %v1411
        %v2099 = vshrl.u32 %v1411, 16
        %v2100 = vshrl.u32 %v1439, 16
        %v2101 = vpack.i.b16 %v2100, %v2099
        %v2104 = vpack.i.b16 %v1445, %v1417
        %v2105 = vshrl.u32 %v1417, 16
        %v2106 = vshrl.u32 %v1445, 16
        %v2107 = vpack.i.b16 %v2106, %v2105
        %v2110 = vpack.i.b16 %v1443, %v1415
        %v2111 = vshrl.u32 %v1415, 16
        %v2112 = vshrl.u32 %v1443, 16
        %v2113 = vpack.i.b16 %v2112, %v2111
        %v2116 = vpack.i.b16 %v1447, %v1419
        %v2117 = vshrl.u32 %v1419, 16
        %v2118 = vshrl.u32 %v1447, 16
        %v2119 = vpack.i.b16 %v2118, %v2117
        %v2122 = vpack.i.b16 %v1495, %v1467
        %v2123 = vshrl.u32 %v1467, 16
        %v2124 = vshrl.u32 %v1495, 16
        %v2125 = vpack.i.b16 %v2124, %v2123
        %v2128 = vpack.i.b16 %v1501, %v1473
        %v2129 = vshrl.u32 %v1473, 16
        %v2130 = vshrl.u32 %v1501, 16
        %v2131 = vpack.i.b16 %v2130, %v2129
        %v2134 = vpack.i.b16 %v1499, %v1471
        %v2135 = vshrl.u32 %v1471, 16
        %v2136 = vshrl.u32 %v1499, 16
        %v2137 = vpack.i.b16 %v2136, %v2135
        %v2140 = vpack.i.b16 %v1503, %v1475
        %v2141 = vshrl.u32 %v1475, 16
        %v2142 = vshrl.u32 %v1503, 16
        %v2143 = vpack.i.b16 %v2142, %v2141
        %v2146 = vpack.i.b16 %v1551, %v1523
        %v2147 = vshrl.u32 %v1523, 16
        %v2148 = vshrl.u32 %v1551, 16
        %v2149 = vpack.i.b16 %v2148, %v2147
        %v2152 = vpack.i.b16 %v1557, %v1529
        %v2153 = vshrl.u32 %v1529, 16
        %v2154 = vshrl.u32 %v1557, 16
        %v2155 = vpack.i.b16 %v2154, %v2153
        %v2158 = vpack.i.b16 %v1555, %v1527
        %v2159 = vshrl.u32 %v1527, 16
        %v2160 = vshrl.u32 %v1555, 16
        %v2161 = vpack.i.b16 %v2160, %v2159
        %v2164 = vpack.i.b16 %v1559, %v1531
        %v2165 = vshrl.u32 %v1531, 16
        %v2166 = vshrl.u32 %v1559, 16
        %v2167 = vpack.i.b16 %v2166, %v2165
        %v2170 = vpack.i.b16 %v1607, %v1579
        %v2171 = vshrl.u32 %v1579, 16
        %v2172 = vshrl.u32 %v1607, 16
        %v2173 = vpack.i.b16 %v2172, %v2171
        %v2176 = vpack.i.b16 %v1613, %v1585
        %v2177 = vshrl.u32 %v1585, 16
        %v2178 = vshrl.u32 %v1613, 16
        %v2179 = vpack.i.b16 %v2178, %v2177
        %v2182 = vpack.i.b16 %v1611, %v1583
        %v2183 = vshrl.u32 %v1583, 16
        %v2184 = vshrl.u32 %v1611, 16
        %v2185 = vpack.i.b16 %v2184, %v2183
        %v2188 = vpack.i.b16 %v1615, %v1587
        %v2189 = vshrl.u32 %v1587, 16
        %v2190 = vshrl.u32 %v1615, 16
        %v2191 = vpack.i.b16 %v2190, %v2189
        %v2194 = vpack.i.b16 %v1663, %v1635
        %v2195 = vshrl.u32 %v1635, 16
        %v2196 = vshrl.u32 %v1663, 16
        %v2197 = vpack.i.b16 %v2196, %v2195
        %v2200 = vpack.i.b16 %v1669, %v1641
        %v2201 = vshrl.u32 %v1641, 16
        %v2202 = vshrl.u32 %v1669, 16
        %v2203 = vpack.i.b16 %v2202, %v2201
        %v2206 = vpack.i.b16 %v1667, %v1639
        %v2207 = vshrl.u32 %v1639, 16
        %v2208 = vshrl.u32 %v1667, 16
        %v2209 = vpack.i.b16 %v2208, %v2207
        %v2212 = vpack.i.b16 %v1671, %v1643
        %v2213 = vshrl.u32 %v1643, 16
        %v2214 = vshrl.u32 %v1671, 16
        %v2215 = vpack.i.b16 %v2214, %v2213
        %v2218 = vpack.i.b16 %v1719, %v1691
        %v2219 = vshrl.u32 %v1691, 16
        %v2220 = vshrl.u32 %v1719, 16
        %v2221 = vpack.i.b16 %v2220, %v2219
        %v2224 = vpack.i.b16 %v1725, %v1697
        %v2225 = vshrl.u32 %v1697, 16
        %v2226 = vshrl.u32 %v1725, 16
        %v2227 = vpack.i.b16 %v2226, %v2225
        %v2230 = vpack.i.b16 %v1723, %v1695
        %v2231 = vshrl.u32 %v1695, 16
        %v2232 = vshrl.u32 %v1723, 16
        %v2233 = vpack.i.b16 %v2232, %v2231
        %v2236 = vpack.i.b16 %v1727, %v1699
        %v2237 = vshrl.u32 %v1699, 16
        %v2238 = vshrl.u32 %v1727, 16
        %v2239 = vpack.i.b16 %v2238, %v2237
        %v2242 = vpack.i.b16 %v1775, %v1747
        %v2243 = vshrl.u32 %v1747, 16
        %v2244 = vshrl.u32 %v1775, 16
        %v2245 = vpack.i.b16 %v2244, %v2243
        %v2248 = vpack.i.b16 %v1781, %v1753
        %v2249 = vshrl.u32 %v1753, 16
        %v2250 = vshrl.u32 %v1781, 16
        %v2251 = vpack.i.b16 %v2250, %v2249
        %v2254 = vpack.i.b16 %v1779, %v1751
        %v2255 = vshrl.u32 %v1751, 16
        %v2256 = vshrl.u32 %v1779, 16
        %v2257 = vpack.i.b16 %v2256, %v2255
        %v2260 = vpack.i.b16 %v1783, %v1755
        %v2261 = vshrl.u32 %v1755, 16
        %v2262 = vshrl.u32 %v1783, 16
        %v2263 = vpack.i.b16 %v2262, %v2261
        %v2266 = vpack.i.b16 %v1831, %v1803
        %v2267 = vshrl.u32 %v1803, 16
        %v2268 = vshrl.u32 %v1831, 16
        %v2269 = vpack.i.b16 %v2268, %v2267
        %v2272 = vpack.i.b16 %v1837, %v1809
        %v2273 = vshrl.u32 %v1809, 16
        %v2274 = vshrl.u32 %v1837, 16
        %v2275 = vpack.i.b16 %v2274, %v2273
        %v2278 = vpack.i.b16 %v1835, %v1807
        %v2279 = vshrl.u32 %v1807, 16
        %v2280 = vshrl.u32 %v1835, 16
        %v2281 = vpack.i.b16 %v2280, %v2279
        %v2284 = vpack.i.b16 %v1839, %v1811
        %v2285 = vshrl.u32 %v1811, 16
        %v2286 = vshrl.u32 %v1839, 16
        %v2287 = vpack.i.b16 %v2286, %v2285
        %v2290 = vpack.i.b16 %v1887, %v1859
        %v2291 = vshrl.u32 %v1859, 16
        %v2292 = vshrl.u32 %v1887, 16
        %v2293 = vpack.i.b16 %v2292, %v2291
        %v2296 = vpack.i.b16 %v1893, %v1865
        %v2297 = vshrl.u32 %v1865, 16
        %v2298 = vshrl.u32 %v1893, 16
        %v2299 = vpack.i.b16 %v2298, %v2297
        %v2302 = vpack.i.b16 %v1891, %v1863
        %v2303 = vshrl.u32 %v1863, 16
        %v2304 = vshrl.u32 %v1891, 16
        %v2305 = vpack.i.b16 %v2304, %v2303
        %v2308 = vpack.i.b16 %v1895, %v1867
        %v2309 = vshrl.u32 %v1867, 16
        %v2310 = vshrl.u32 %v1895, 16
        %v2311 = vpack.i.b16 %v2310, %v2309
        %v2314 = vpack.i.b16 %v1943, %v1915
        %v2315 = vshrl.u32 %v1915, 16
        %v2316 = vshrl.u32 %v1943, 16
        %v2317 = vpack.i.b16 %v2316, %v2315
        %v2320 = vpack.i.b16 %v1949, %v1921
        %v2321 = vshrl.u32 %v1921, 16
        %v2322 = vshrl.u32 %v1949, 16
        %v2323 = vpack.i.b16 %v2322, %v2321
        %v2326 = vpack.i.b16 %v1947, %v1919
        %v2327 = vshrl.u32 %v1919, 16
        %v2328 = vshrl.u32 %v1947, 16
        %v2329 = vpack.i.b16 %v2328, %v2327
        %v2332 = vpack.i.b16 %v1951, %v1923
        %v2333 = vshrl.u32 %v1923, 16
        %v2334 = vshrl.u32 %v1951, 16
        %v2335 = vpack.i.b16 %v2334, %v2333
        %v2336 = vunpack.c.l.b16 %v1954
        %v2337 = vunpack.c.l.b16 %v1978
        %v2338 = vunpack.c.l.b16 %v2002
        %v2339 = vunpack.c.l.b16 %v2026
        %v2340 = vunpack.c.l.b16 %v2050
        %v2341 = vunpack.c.l.b16 %v2074
        %v2342 = vunpack.c.l.b16 %v2098
        %v2343 = vunpack.c.l.b16 %v2122
        %v2344 = vunpack.c.l.b16 %v2146
        %v2345 = vunpack.c.l.b16 %v2170
        %v2346 = vunpack.c.l.b16 %v2194
        %v2347 = vunpack.c.l.b16 %v2218
        %v2348 = vunpack.c.l.b16 %v2242
        %v2349 = vunpack.c.l.b16 %v2266
        %v2350 = vunpack.c.l.b16 %v2290
        %v2351 = vunpack.c.l.b16 %v2314
        %v2352 = vpack.c.b16 %v2337, %v2336
        %v2353 = vpack.c.b16 %v2339, %v2338
        %v2354 = vpack.c.b16 %v2341, %v2340
        %v2355 = vpack.c.b16 %v2343, %v2342
        %v2356 = vpack.c.b16 %v2345, %v2344
        %v2357 = vpack.c.b16 %v2347, %v2346
        %v2358 = vpack.c.b16 %v2349, %v2348
        %v2359 = vpack.c.b16 %v2351, %v2350
        %v2360 = vunpack.c.l.b16 %v1957
        %v2361 = vunpack.c.l.b16 %v1981
        %v2362 = vunpack.c.l.b16 %v2005
        %v2363 = vunpack.c.l.b16 %v2029
        %v2364 = vunpack.c.l.b16 %v2053
        %v2365 = vunpack.c.l.b16 %v2077
        %v2366 = vunpack.c.l.b16 %v2101
        %v2367 = vunpack.c.l.b16 %v2125
        %v2368 = vunpack.c.l.b16 %v2149
        %v2369 = vunpack.c.l.b16 %v2173
        %v2370 = vunpack.c.l.b16 %v2197
        %v2371 = vunpack.c.l.b16 %v2221
        %v2372 = vunpack.c.l.b16 %v2245
        %v2373 = vunpack.c.l.b16 %v2269
        %v2374 = vunpack.c.l.b16 %v2293
        %v2375 = vunpack.c.l.b16 %v2317
        %v2376 = vpack.c.b16 %v2361, %v2360
        %v2377 = vpack.c.b16 %v2363, %v2362
        %v2378 = vpack.c.b16 %v2365, %v2364
        %v2379 = vpack.c.b16 %v2367, %v2366
        %v2380 = vpack.c.b16 %v2369, %v2368
        %v2381 = vpack.c.b16 %v2371, %v2370
        %v2382 = vpack.c.b16 %v2373, %v2372
        %v2383 = vpack.c.b16 %v2375, %v2374
        %2384 = vrot.lane.b32.xlu0 %v2376, 16
        %v2385 = vpop.permute.xlu0 %2384
        %2386 = vrot.lane.b32.xlu0 %v2377, 16
        %v2387 = vpop.permute.xlu0 %2386
        %2388 = vrot.lane.b32.xlu0 %v2378, 16
        %v2389 = vpop.permute.xlu0 %2388
        %2390 = vrot.lane.b32.xlu0 %v2379, 16
        %v2391 = vpop.permute.xlu0 %2390
        %2392 = vrot.lane.b32.xlu0 %v2380, 16
        %v2393 = vpop.permute.xlu0 %2392
        %2394 = vrot.lane.b32.xlu0 %v2381, 16
        %v2395 = vpop.permute.xlu0 %2394
        %2396 = vrot.lane.b32.xlu0 %v2382, 16
        %v2397 = vpop.permute.xlu0 %2396
        %2398 = vrot.lane.b32.xlu0 %v2383, 16
        %v2399 = vpop.permute.xlu0 %2398
        %v2400 = vunpack.c.l.b16 %v1960
        %v2401 = vunpack.c.l.b16 %v1984
        %v2402 = vunpack.c.l.b16 %v2008
        %v2403 = vunpack.c.l.b16 %v2032
        %v2404 = vunpack.c.l.b16 %v2056
        %v2405 = vunpack.c.l.b16 %v2080
        %v2406 = vunpack.c.l.b16 %v2104
        %v2407 = vunpack.c.l.b16 %v2128
        %v2408 = vunpack.c.l.b16 %v2152
        %v2409 = vunpack.c.l.b16 %v2176
        %v2410 = vunpack.c.l.b16 %v2200
        %v2411 = vunpack.c.l.b16 %v2224
        %v2412 = vunpack.c.l.b16 %v2248
        %v2413 = vunpack.c.l.b16 %v2272
        %v2414 = vunpack.c.l.b16 %v2296
        %v2415 = vunpack.c.l.b16 %v2320
        %v2416 = vpack.c.b16 %v2401, %v2400
        %v2417 = vpack.c.b16 %v2403, %v2402
        %v2418 = vpack.c.b16 %v2405, %v2404
        %v2419 = vpack.c.b16 %v2407, %v2406
        %v2420 = vpack.c.b16 %v2409, %v2408
        %v2421 = vpack.c.b16 %v2411, %v2410
        %v2422 = vpack.c.b16 %v2413, %v2412
        %v2423 = vpack.c.b16 %v2415, %v2414
        %2424 = vrot.lane.b32.xlu0 %v2416, 32
        %v2425 = vpop.permute.xlu0 %2424
        %2426 = vrot.lane.b32.xlu0 %v2417, 32
        %v2427 = vpop.permute.xlu0 %2426
        %2428 = vrot.lane.b32.xlu0 %v2418, 32
        %v2429 = vpop.permute.xlu0 %2428
        %2430 = vrot.lane.b32.xlu0 %v2419, 32
        %v2431 = vpop.permute.xlu0 %2430
        %2432 = vrot.lane.b32.xlu0 %v2420, 32
        %v2433 = vpop.permute.xlu0 %2432
        %2434 = vrot.lane.b32.xlu0 %v2421, 32
        %v2435 = vpop.permute.xlu0 %2434
        %2436 = vrot.lane.b32.xlu0 %v2422, 32
        %v2437 = vpop.permute.xlu0 %2436
        %2438 = vrot.lane.b32.xlu0 %v2423, 32
        %v2439 = vpop.permute.xlu0 %2438
        %v2440 = vunpack.c.l.b16 %v1963
        %v2441 = vunpack.c.l.b16 %v1987
        %v2442 = vunpack.c.l.b16 %v2011
        %v2443 = vunpack.c.l.b16 %v2035
        %v2444 = vunpack.c.l.b16 %v2059
        %v2445 = vunpack.c.l.b16 %v2083
        %v2446 = vunpack.c.l.b16 %v2107
        %v2447 = vunpack.c.l.b16 %v2131
        %v2448 = vunpack.c.l.b16 %v2155
        %v2449 = vunpack.c.l.b16 %v2179
        %v2450 = vunpack.c.l.b16 %v2203
        %v2451 = vunpack.c.l.b16 %v2227
        %v2452 = vunpack.c.l.b16 %v2251
        %v2453 = vunpack.c.l.b16 %v2275
        %v2454 = vunpack.c.l.b16 %v2299
        %v2455 = vunpack.c.l.b16 %v2323
        %v2456 = vpack.c.b16 %v2441, %v2440
        %v2457 = vpack.c.b16 %v2443, %v2442
        %v2458 = vpack.c.b16 %v2445, %v2444
        %v2459 = vpack.c.b16 %v2447, %v2446
        %v2460 = vpack.c.b16 %v2449, %v2448
        %v2461 = vpack.c.b16 %v2451, %v2450
        %v2462 = vpack.c.b16 %v2453, %v2452
        %v2463 = vpack.c.b16 %v2455, %v2454
        %2464 = vrot.lane.b32.xlu0 %v2456, 48
        %v2465 = vpop.permute.xlu0 %2464
        %2466 = vrot.lane.b32.xlu0 %v2457, 48
        %v2467 = vpop.permute.xlu0 %2466
        %2468 = vrot.lane.b32.xlu0 %v2458, 48
        %v2469 = vpop.permute.xlu0 %2468
        %2470 = vrot.lane.b32.xlu0 %v2459, 48
        %v2471 = vpop.permute.xlu0 %2470
        %2472 = vrot.lane.b32.xlu0 %v2460, 48
        %v2473 = vpop.permute.xlu0 %2472
        %2474 = vrot.lane.b32.xlu0 %v2461, 48
        %v2475 = vpop.permute.xlu0 %2474
        %2476 = vrot.lane.b32.xlu0 %v2462, 48
        %v2477 = vpop.permute.xlu0 %2476
        %2478 = vrot.lane.b32.xlu0 %v2463, 48
        %v2479 = vpop.permute.xlu0 %2478
        %v2480 = vunpack.c.l.b16 %v1966
        %v2481 = vunpack.c.l.b16 %v1990
        %v2482 = vunpack.c.l.b16 %v2014
        %v2483 = vunpack.c.l.b16 %v2038
        %v2484 = vunpack.c.l.b16 %v2062
        %v2485 = vunpack.c.l.b16 %v2086
        %v2486 = vunpack.c.l.b16 %v2110
        %v2487 = vunpack.c.l.b16 %v2134
        %v2488 = vunpack.c.l.b16 %v2158
        %v2489 = vunpack.c.l.b16 %v2182
        %v2490 = vunpack.c.l.b16 %v2206
        %v2491 = vunpack.c.l.b16 %v2230
        %v2492 = vunpack.c.l.b16 %v2254
        %v2493 = vunpack.c.l.b16 %v2278
        %v2494 = vunpack.c.l.b16 %v2302
        %v2495 = vunpack.c.l.b16 %v2326
        %v2496 = vpack.c.b16 %v2481, %v2480
        %v2497 = vpack.c.b16 %v2483, %v2482
        %v2498 = vpack.c.b16 %v2485, %v2484
        %v2499 = vpack.c.b16 %v2487, %v2486
        %v2500 = vpack.c.b16 %v2489, %v2488
        %v2501 = vpack.c.b16 %v2491, %v2490
        %v2502 = vpack.c.b16 %v2493, %v2492
        %v2503 = vpack.c.b16 %v2495, %v2494
        %2504 = vrot.lane.b32.xlu0 %v2496, 64
        %v2505 = vpop.permute.xlu0 %2504
        %2506 = vrot.lane.b32.xlu0 %v2497, 64
        %v2507 = vpop.permute.xlu0 %2506
        %2508 = vrot.lane.b32.xlu0 %v2498, 64
        %v2509 = vpop.permute.xlu0 %2508
        %2510 = vrot.lane.b32.xlu0 %v2499, 64
        %v2511 = vpop.permute.xlu0 %2510
        %2512 = vrot.lane.b32.xlu0 %v2500, 64
        %v2513 = vpop.permute.xlu0 %2512
        %2514 = vrot.lane.b32.xlu0 %v2501, 64
        %v2515 = vpop.permute.xlu0 %2514
        %2516 = vrot.lane.b32.xlu0 %v2502, 64
        %v2517 = vpop.permute.xlu0 %2516
        %2518 = vrot.lane.b32.xlu0 %v2503, 64
        %v2519 = vpop.permute.xlu0 %2518
        %v2520 = vunpack.c.l.b16 %v1969
        %v2521 = vunpack.c.l.b16 %v1993
        %v2522 = vunpack.c.l.b16 %v2017
        %v2523 = vunpack.c.l.b16 %v2041
        %v2524 = vunpack.c.l.b16 %v2065
        %v2525 = vunpack.c.l.b16 %v2089
        %v2526 = vunpack.c.l.b16 %v2113
        %v2527 = vunpack.c.l.b16 %v2137
        %v2528 = vunpack.c.l.b16 %v2161
        %v2529 = vunpack.c.l.b16 %v2185
        %v2530 = vunpack.c.l.b16 %v2209
        %v2531 = vunpack.c.l.b16 %v2233
        %v2532 = vunpack.c.l.b16 %v2257
        %v2533 = vunpack.c.l.b16 %v2281
        %v2534 = vunpack.c.l.b16 %v2305
        %v2535 = vunpack.c.l.b16 %v2329
        %v2536 = vpack.c.b16 %v2521, %v2520
        %v2537 = vpack.c.b16 %v2523, %v2522
        %v2538 = vpack.c.b16 %v2525, %v2524
        %v2539 = vpack.c.b16 %v2527, %v2526
        %v2540 = vpack.c.b16 %v2529, %v2528
        %v2541 = vpack.c.b16 %v2531, %v2530
        %v2542 = vpack.c.b16 %v2533, %v2532
        %v2543 = vpack.c.b16 %v2535, %v2534
        %2544 = vrot.lane.b32.xlu0 %v2536, 80
        %v2545 = vpop.permute.xlu0 %2544
        %2546 = vrot.lane.b32.xlu0 %v2537, 80
        %v2547 = vpop.permute.xlu0 %2546
        %2548 = vrot.lane.b32.xlu0 %v2538, 80
        %v2549 = vpop.permute.xlu0 %2548
        %2550 = vrot.lane.b32.xlu0 %v2539, 80
        %v2551 = vpop.permute.xlu0 %2550
        %2552 = vrot.lane.b32.xlu0 %v2540, 80
        %v2553 = vpop.permute.xlu0 %2552
        %2554 = vrot.lane.b32.xlu0 %v2541, 80
        %v2555 = vpop.permute.xlu0 %2554
        %2556 = vrot.lane.b32.xlu0 %v2542, 80
        %v2557 = vpop.permute.xlu0 %2556
        %2558 = vrot.lane.b32.xlu0 %v2543, 80
        %v2559 = vpop.permute.xlu0 %2558
        %v2560 = vunpack.c.l.b16 %v1972
        %v2561 = vunpack.c.l.b16 %v1996
        %v2562 = vunpack.c.l.b16 %v2020
        %v2563 = vunpack.c.l.b16 %v2044
        %v2564 = vunpack.c.l.b16 %v2068
        %v2565 = vunpack.c.l.b16 %v2092
        %v2566 = vunpack.c.l.b16 %v2116
        %v2567 = vunpack.c.l.b16 %v2140
        %v2568 = vunpack.c.l.b16 %v2164
        %v2569 = vunpack.c.l.b16 %v2188
        %v2570 = vunpack.c.l.b16 %v2212
        %v2571 = vunpack.c.l.b16 %v2236
        %v2572 = vunpack.c.l.b16 %v2260
        %v2573 = vunpack.c.l.b16 %v2284
        %v2574 = vunpack.c.l.b16 %v2308
        %v2575 = vunpack.c.l.b16 %v2332
        %v2576 = vpack.c.b16 %v2561, %v2560
        %v2577 = vpack.c.b16 %v2563, %v2562
        %v2578 = vpack.c.b16 %v2565, %v2564
        %v2579 = vpack.c.b16 %v2567, %v2566
        %v2580 = vpack.c.b16 %v2569, %v2568
        %v2581 = vpack.c.b16 %v2571, %v2570
        %v2582 = vpack.c.b16 %v2573, %v2572
        %v2583 = vpack.c.b16 %v2575, %v2574
        %2584 = vrot.lane.b32.xlu0 %v2576, 96
        %v2585 = vpop.permute.xlu0 %2584
        %2586 = vrot.lane.b32.xlu0 %v2577, 96
        %v2587 = vpop.permute.xlu0 %2586
        %2588 = vrot.lane.b32.xlu0 %v2578, 96
        %v2589 = vpop.permute.xlu0 %2588
        %2590 = vrot.lane.b32.xlu0 %v2579, 96
        %v2591 = vpop.permute.xlu0 %2590
        %2592 = vrot.lane.b32.xlu0 %v2580, 96
        %v2593 = vpop.permute.xlu0 %2592
        %2594 = vrot.lane.b32.xlu0 %v2581, 96
        %v2595 = vpop.permute.xlu0 %2594
        %2596 = vrot.lane.b32.xlu0 %v2582, 96
        %v2597 = vpop.permute.xlu0 %2596
        %2598 = vrot.lane.b32.xlu0 %v2583, 96
        %v2599 = vpop.permute.xlu0 %2598
        %v2600 = vunpack.c.l.b16 %v1975
        %v2601 = vunpack.c.l.b16 %v1999
        %v2602 = vunpack.c.l.b16 %v2023
        %v2603 = vunpack.c.l.b16 %v2047
        %v2604 = vunpack.c.l.b16 %v2071
        %v2605 = vunpack.c.l.b16 %v2095
        %v2606 = vunpack.c.l.b16 %v2119
        %v2607 = vunpack.c.l.b16 %v2143
        %v2608 = vunpack.c.l.b16 %v2167
        %v2609 = vunpack.c.l.b16 %v2191
        %v2610 = vunpack.c.l.b16 %v2215
        %v2611 = vunpack.c.l.b16 %v2239
        %v2612 = vunpack.c.l.b16 %v2263
        %v2613 = vunpack.c.l.b16 %v2287
        %v2614 = vunpack.c.l.b16 %v2311
        %v2615 = vunpack.c.l.b16 %v2335
        %v2616 = vpack.c.b16 %v2601, %v2600
        %v2617 = vpack.c.b16 %v2603, %v2602
        %v2618 = vpack.c.b16 %v2605, %v2604
        %v2619 = vpack.c.b16 %v2607, %v2606
        %v2620 = vpack.c.b16 %v2609, %v2608
        %v2621 = vpack.c.b16 %v2611, %v2610
        %v2622 = vpack.c.b16 %v2613, %v2612
        %v2623 = vpack.c.b16 %v2615, %v2614
        %2624 = vrot.lane.b32.xlu0 %v2616, 112
        %v2625 = vpop.permute.xlu0 %2624
        %2626 = vrot.lane.b32.xlu0 %v2617, 112
        %v2627 = vpop.permute.xlu0 %2626
        %2628 = vrot.lane.b32.xlu0 %v2618, 112
        %v2629 = vpop.permute.xlu0 %2628
        %2630 = vrot.lane.b32.xlu0 %v2619, 112
        %v2631 = vpop.permute.xlu0 %2630
        %2632 = vrot.lane.b32.xlu0 %v2620, 112
        %v2633 = vpop.permute.xlu0 %2632
        %2634 = vrot.lane.b32.xlu0 %v2621, 112
        %v2635 = vpop.permute.xlu0 %2634
        %2636 = vrot.lane.b32.xlu0 %v2622, 112
        %v2637 = vpop.permute.xlu0 %2636
        %2638 = vrot.lane.b32.xlu0 %v2623, 112
        %v2639 = vpop.permute.xlu0 %2638
        %vm2640 = vcmask 130048
        %v2643 = vsel %vm2640, %v2352, %v2385
        %v2646 = vsel %vm2640, %v2353, %v2387
        %v2649 = vsel %vm2640, %v2354, %v2389
        %v2652 = vsel %vm2640, %v2355, %v2391
        %v2655 = vsel %vm2640, %v2356, %v2393
        %v2658 = vsel %vm2640, %v2357, %v2395
        %v2661 = vsel %vm2640, %v2358, %v2397
        %v2664 = vsel %vm2640, %v2359, %v2399
        %vm2665 = vcmask 261120
        %v2667 = vsel %vm2665, %v2643, %v2425
        %v2669 = vsel %vm2665, %v2646, %v2427
        %v2671 = vsel %vm2665, %v2649, %v2429
        %v2673 = vsel %vm2665, %v2652, %v2431
        %v2675 = vsel %vm2665, %v2655, %v2433
        %v2677 = vsel %vm2665, %v2658, %v2435
        %v2679 = vsel %vm2665, %v2661, %v2437
        %v2681 = vsel %vm2665, %v2664, %v2439
        %vm2682 = vcmask 392192
        %v2684 = vsel %vm2682, %v2667, %v2465
        %v2686 = vsel %vm2682, %v2669, %v2467
        %v2688 = vsel %vm2682, %v2671, %v2469
        %v2690 = vsel %vm2682, %v2673, %v2471
        %v2692 = vsel %vm2682, %v2675, %v2473
        %v2694 = vsel %vm2682, %v2677, %v2475
        %v2696 = vsel %vm2682, %v2679, %v2477
        %v2698 = vsel %vm2682, %v2681, %v2479
        %vm2699 = vcmask 523264
        %v2701 = vsel %vm2699, %v2684, %v2505
        %v2703 = vsel %vm2699, %v2686, %v2507
        %v2705 = vsel %vm2699, %v2688, %v2509
        %v2707 = vsel %vm2699, %v2690, %v2511
        %v2709 = vsel %vm2699, %v2692, %v2513
        %v2711 = vsel %vm2699, %v2694, %v2515
        %v2713 = vsel %vm2699, %v2696, %v2517
        %v2715 = vsel %vm2699, %v2698, %v2519
        %vm2716 = vcmask 654336
        %v2718 = vsel %vm2716, %v2701, %v2545
        %v2720 = vsel %vm2716, %v2703, %v2547
        %v2722 = vsel %vm2716, %v2705, %v2549
        %v2724 = vsel %vm2716, %v2707, %v2551
        %v2726 = vsel %vm2716, %v2709, %v2553
        %v2728 = vsel %vm2716, %v2711, %v2555
        %v2730 = vsel %vm2716, %v2713, %v2557
        %v2732 = vsel %vm2716, %v2715, %v2559
        %vm2733 = vcmask 785408
        %v2735 = vsel %vm2733, %v2718, %v2585
        %v2737 = vsel %vm2733, %v2720, %v2587
        %v2739 = vsel %vm2733, %v2722, %v2589
        %v2741 = vsel %vm2733, %v2724, %v2591
        %v2743 = vsel %vm2733, %v2726, %v2593
        %v2745 = vsel %vm2733, %v2728, %v2595
        %v2747 = vsel %vm2733, %v2730, %v2597
        %v2749 = vsel %vm2733, %v2732, %v2599
        %vm2750 = vcmask 916480
        %v2752 = vsel %vm2750, %v2735, %v2625
        %v2755 = vsel %vm2750, %v2737, %v2627
        %v2758 = vsel %vm2750, %v2739, %v2629
        %v2761 = vsel %vm2750, %v2741, %v2631
        %v2764 = vsel %vm2750, %v2743, %v2633
        %v2767 = vsel %vm2750, %v2745, %v2635
        %v2770 = vsel %vm2750, %v2747, %v2637
        %v2773 = vsel %vm2750, %v2749, %v2639
        %v2775 = vld [vmem:[%s1] sm:$0xf]
        %2776 = vmatpush.bf16.msra.mxu0 %v2773
        %2777 = vmatpush.bf16.msra.mxu0 %v2770
        %2778 = vmatpush.bf16.msra.mxu0 %v2767
        %2779 = vmatpush.bf16.msra.mxu0 %v2764
        %2780 = vmatpush.bf16.msra.mxu0 %v2761
        %2781 = vmatpush.bf16.msra.mxu0 %v2758
        %2782 = vmatpush.bf16.msra.mxu0 %v2755
        %2783 = vmatpush.bf16.msra.mxu0 %v2752
        %2784 = vmatmul.bf16.gmra.mxu0 %v2775
        %v2785 = vpop.f32.mrf.mxu0
        %v2786 = vadd.f32 0.0, %v2785
        %v2787 = vpop.f32.mrf.mxu0
        %2788 = vdwg.mxu0
        %2789 = vst [vmem:[%s150] sm:$0xff] %v2786
        %s2790 = sand.u32 %s85, 1
        %s2791 = scalar_lea.sflag [#allocation4], %s2790
        %s2792 = sand.u32 %s85, 1
        %s2793 = smul.addr %s2792, 8
        %s2794 = scalar_lea.vmem [#allocation3], %s2793
        // Predicated region
        $region29: #{tpu_custom_call.1} parent=27 // pred_check
          %p2795 = pneg %p95
        $region30: #{tpu_custom_call.1} parent=27 // pred_check_branch
          %2797 = sbr.rel (%p2795) target = $region32
        $region31: #{tpu_custom_call.1} parent=27 // pred_region
          %2799 = vsyncadd %s2791, 0
          %s2800 = smul.addr %s20, 2
          %s2801 = sadd.s32 %s21, %s2800
          %s2802 = smul.addr %s2801, 8
          %s2803 = scalar_lea.hbm %s2, %s2802
          %s2805 = sshll.u32 %s2794, 4
          %s2806 = int_to_ptr.vmem [resolvable:$true] %s2805
          %s2807 = sshll.u32 %s2803, 4
          %s2808 = int_to_ptr.hbm [resolvable:$true] %s2807
          %2810 = dma.vmem_to_hbm [thread:$0]  %s2806, 128, %s2808, %s2791
        $region32: #{tpu_custom_call.1} parent=27 // pred_fallthru
          _
      $region28: #{tpu_custom_call.1} parent=5 // pred_fallthru
        _
      %p2811 = scmp.le.s32.totalorder 2, %s11
      // Predicated region
      $region33: #{tpu_custom_call.1} parent=5 // pred_check
        %p2812 = pneg %p2811
      $region34: #{tpu_custom_call.1} parent=5 // pred_check_branch
        %2814 = sbr.rel (%p2812) target = $region36
      $region35: #{tpu_custom_call.1} parent=5 // pred_region
        %s2815 = ssub.s32 %s11, 2
        // Predicated region
        $region37: #{tpu_custom_call.1} parent=35 // pred_check
          %p2816 = pneg %p101
        $region38: #{tpu_custom_call.1} parent=35 // pred_check_branch
          %2818 = sbr.rel (%p2816) target = $region40
        $region39: #{tpu_custom_call.1} parent=35 // pred_region
          %s2819 = sand.u32 %s86, 1
          %s2820 = scalar_lea.sflag [#allocation4], %s2819
          %s2821 = sand.u32 %s86, 1
          %s2822 = smul.addr %s2821, 8
          %s2823 = scalar_lea.vmem [#allocation3], %s2822
          %2825 = dma.done %s2820, 128
        $region40: #{tpu_custom_call.1} parent=35 // pred_fallthru
          _
      $region36: #{tpu_custom_call.1} parent=5 // pred_fallthru
        _
    $region6: #{tpu_custom_call.1} parent=1 // loop_footer
      %s15 = sadd.s32 1, %s11
    $region7: #{tpu_custom_call.1} parent=1 // loop_footer_branch
      %10 = sbr.rel target = $region3
    $region8: #{tpu_custom_call.1} parent=1 // loop_exit
      _
    %2826 = vsyncpa [#allocation4], 1
    %s2827 = scalar_lea.sflag [#allocation4], 1
    %2828 = vsyncpa %s2827, 1

</llo_original>
